<compile_context>
chip_gen: v7x
topology: tpu7x:2x2x1
jax: 0.10.0
libtpu: 0.0.40
codegen_flags: <defaults>
</compile_context>

<pallas_src>
import functools

import jax
import jax.numpy as jnp
from jax.experimental import pallas as pl
from jax.experimental.pallas import tpu as pltpu


def _lstm_kernel(x_ref, wih_ref, whh_ref, b_ref, out_ref, *, precision):
    """Full single-layer LSTM forward in one kernel invocation.

    x_ref   : (B, T, I)  batch-first input (bf16 or f32 MXU operands)
    wih_ref : (I, 4H)    W_ih^T
    whh_ref : (H, 4H)    W_hh^T
    b_ref   : (1, 4H)    b_ih + b_hh (f32)
    out_ref : (B, T, H)  output hidden states (f32), batch-first
    """
    B, T, I = x_ref.shape
    H = whh_ref.shape[0]
    H4 = 4 * H

    # ---- Hoisted input projection: ONE MXU matmul with M = B*T rows --------
    # Batch-first (B, T, I) -> (B*T, I) is a pure reshape (no transpose).
    x_all = x_ref[...].reshape(B * T, I)
    proj = jnp.dot(x_all, wih_ref[...],
                   preferred_element_type=jnp.float32, precision=precision)
    proj = (proj + b_ref[...]).reshape(B, T, H4)   # kept as a value (few vregs)

    w_hh = whh_ref[...]          # recurrent weights, loaded once
    mxu_dtype = w_hh.dtype

    h = jnp.zeros((B, H), jnp.float32)
    c = jnp.zeros((B, H), jnp.float32)
    hs = []

    # ---- Recurrence (fully unrolled; T is static & small) ------------------
    # Only h_{t-1} @ W_hh^T sits on the serial critical path per step.
    # TODO(synk): pin W_hh in the MXU across steps (pltpu.matmul_push_rhs /
    # matmul_acc_lhs / matmul_pop) to drop the per-step weight push, and chunk
    # T with carried (h, c) scratch for long sequences (v7x 64 MiB VMEM
    # budget) plus a "parallel" batch grid axis to use both v7x TensorCores.
    for t in range(T):
        gates = proj[:, t, :] + jnp.dot(
            h.astype(mxu_dtype), w_hh,
            preferred_element_type=jnp.float32, precision=precision)   # (B, 4H)

        # Full-vreg nonlinearities over all 4H lanes (unused quarters saturate
        # harmlessly), then static lane slices — intentional.
        sig = jax.nn.sigmoid(gates)
        tnh = jnp.tanh(gates)
        i_g = sig[:, 0 * H:1 * H]
        f_g = sig[:, 1 * H:2 * H]
        g_g = tnh[:, 2 * H:3 * H]
        o_g = sig[:, 3 * H:4 * H]

        c = f_g * c + i_g * g_g
        h = o_g * jnp.tanh(c)
        hs.append(h)

    # Single bulk, batch-first store (one lane-dense HBM writeback at the end).
    out_ref[...] = jnp.stack(hs, axis=1).astype(out_ref.dtype)


def selfies_encoder_forward(x_btf, w_ih, w_hh, b_ih, b_hh, *,
                            mxu_dtype=jnp.bfloat16, exact=False):
    """SELFIESEncoder.forward (use_cell=False): full nn.LSTM output sequence.

    x_btf : (B, T, I)  batch-first input (SELFIES one-hot / embedding)
    w_ih  : (4H, I), w_hh : (4H, H), b_ih / b_hh : (4H,)
    mxu_dtype : MXU-operand dtype (bf16 default — MXU-native on v5e/v6e/v7x;
                state & accumulation stay f32 via preferred_element_type).
    exact : use f32 operands + Precision.HIGHEST matmuls instead.
    returns: (B, T, H) float32.
    """
    if exact:
        mxu_dtype = jnp.float32
        precision = jax.lax.Precision.HIGHEST
    else:
        precision = None

    B, T, I = x_btf.shape
    H4 = w_ih.shape[0]
    H = H4 // 4

    # Pad B up to a sublane multiple so the (B*T, I) reshape and the (B, 4H)
    # gate vregs stay layout-friendly; padded rows are sliced off at the end.
    Bp = ((B + 7) // 8) * 8
    if Bp != B:
        x_btf = jnp.pad(x_btf, ((0, Bp - B), (0, 0), (0, 0)))

    x_in = x_btf.astype(mxu_dtype)                             # (Bp, T, I) — no transpose
    wih_t = jnp.transpose(w_ih).astype(mxu_dtype)              # (I, 4H)   (tiny)
    whh_t = jnp.transpose(w_hh).astype(mxu_dtype)              # (H, 4H)   (tiny)
    bias = (b_ih + b_hh).astype(jnp.float32).reshape(1, H4)    # (1, 4H)

    vmem = pl.BlockSpec(memory_space=pltpu.MemorySpace.VMEM)
    out = pl.pallas_call(
        functools.partial(_lstm_kernel, precision=precision),
        out_shape=jax.ShapeDtypeStruct((Bp, T, H), jnp.float32),
        in_specs=[vmem, vmem, vmem, vmem],
        out_specs=vmem,
    )(x_in, wih_t, whh_t, bias)

    return out[:B] if Bp != B else out


def _reference_lstm(x_btf, w_ih, w_hh, b_ih, b_hh):
    """Pure-JAX reference (lax.scan, HIGHEST-precision f32 matmuls)."""
    B, T, I = x_btf.shape
    H = w_hh.shape[1]
    b = b_ih + b_hh
    hp = jax.lax.Precision.HIGHEST

    def step(carry, x_t):
        h, c = carry
        gates = (jnp.dot(x_t, w_ih.T, precision=hp)
                 + jnp.dot(h, w_hh.T, precision=hp) + b)
        i_g = jax.nn.sigmoid(gates[:, 0 * H:1 * H])
        f_g = jax.nn.sigmoid(gates[:, 1 * H:2 * H])
        g_g = jnp.tanh(gates[:, 2 * H:3 * H])
        o_g = jax.nn.sigmoid(gates[:, 3 * H:4 * H])
        c = f_g * c + i_g * g_g
        h = o_g * jnp.tanh(c)
        return (h, c), h

    h0 = jnp.zeros((B, H), jnp.float32)
    c0 = jnp.zeros((B, H), jnp.float32)
    (_, _), hs = jax.lax.scan(step, (h0, c0), jnp.transpose(x_btf, (1, 0, 2)))
    return jnp.transpose(hs, (1, 0, 2))


if __name__ == "__main__":
    # Small deterministic configuration consistent with the module:
    #   alphabet_size (input feature size) = 32, n_state_neurons (hidden) = 32,
    #   num_layers = 1, bidirectional = False, use_cell = False.
    B, T, I, H = 8, 8, 32, 32

    key = jax.random.PRNGKey(0)
    kx, k1, k2, k3, k4 = jax.random.split(key, 5)

    # nn.LSTM init: uniform(-1/sqrt(H), 1/sqrt(H)) for all params.
    bound = 1.0 / jnp.sqrt(jnp.float32(H))
    x = jax.random.normal(kx, (B, T, I), jnp.float32)   # SELFIES one-hot stand-in
    w_ih = jax.random.uniform(k1, (4 * H, I), jnp.float32, -bound, bound)
    w_hh = jax.random.uniform(k2, (4 * H, H), jnp.float32, -bound, bound)
    b_ih = jax.random.uniform(k3, (4 * H,), jnp.float32, -bound, bound)
    b_hh = jax.random.uniform(k4, (4 * H,), jnp.float32, -bound, bound)

    ref = _reference_lstm(x, w_ih, w_hh, b_ih, b_hh)

    # Default path: bf16 MXU operands, f32 state/accumulation.
    out = selfies_encoder_forward(x, w_ih, w_hh, b_ih, b_hh)
    out = jax.block_until_ready(out)
    assert out.shape == (B, T, H)
    assert jnp.allclose(out, ref, atol=1e-1, rtol=0.0), "bf16 path diverged"

    # Exact path: f32 operands with Precision.HIGHEST matmuls.
    out_exact = selfies_encoder_forward(x, w_ih, w_hh, b_ih, b_hh, exact=True)
    out_exact = jax.block_until_ready(out_exact)
    assert out_exact.shape == (B, T, H)
    assert jnp.allclose(out_exact, ref, atol=1e-4, rtol=1e-4), "f32 mismatch vs reference"

    print("KERNEL_OK")
</pallas_src>

<mosaic_0001>
module attributes {stable_mosaic.version = 11 : i64} {
  func.func @_lstm_kernel(%arg0: memref<8x8x32xbf16, #tpu.memory_space<vmem>>, %arg1: memref<32x128xbf16, #tpu.memory_space<vmem>>, %arg2: memref<32x128xbf16, #tpu.memory_space<vmem>>, %arg3: memref<1x128xf32, #tpu.memory_space<vmem>>, %arg4: memref<8x8x32xf32, #tpu.memory_space<vmem>>) attributes {dimension_semantics = [], scalar_prefetch = 0 : i64, scratch_operands = 0 : i64, tpu.core_type = #tpu.core_type<tc>} {
    %c0 = arith.constant 0 : index
    %c0_0 = arith.constant 0 : index
    %c0_1 = arith.constant 0 : index
    %0 = vector.load %arg0[%c0, %c0_0, %c0_1] : memref<8x8x32xbf16, #tpu.memory_space<vmem>>, vector<8x8x32xbf16>
    %1 = vector.shape_cast %0 : vector<8x8x32xbf16> to vector<64x32xbf16>
    %c0_2 = arith.constant 0 : index
    %c0_3 = arith.constant 0 : index
    %2 = vector.load %arg1[%c0_2, %c0_3] : memref<32x128xbf16, #tpu.memory_space<vmem>>, vector<32x128xbf16>
    %cst = arith.constant dense<0.000000e+00> : vector<64x128xf32>
    %3 = tpu.matmul %1, %2, %cst {dimension_numbers = #tpu.dot_dimension_numbers<[1], [0], [0], [1], [0, 0, 1, 1], [], []>} : vector<64x32xbf16>, vector<32x128xbf16>, vector<64x128xf32> -> vector<64x128xf32>
    %c0_4 = arith.constant 0 : index
    %c0_5 = arith.constant 0 : index
    %4 = vector.load %arg3[%c0_4, %c0_5] : memref<1x128xf32, #tpu.memory_space<vmem>>, vector<1x128xf32>
    %5 = vector.broadcast %4 : vector<1x128xf32> to vector<64x128xf32>
    %6 = arith.addf %3, %5 : vector<64x128xf32>
    %7 = vector.shape_cast %6 : vector<64x128xf32> to vector<8x8x128xf32>
    %c0_6 = arith.constant 0 : index
    %c0_7 = arith.constant 0 : index
    %8 = vector.load %arg2[%c0_6, %c0_7] : memref<32x128xbf16, #tpu.memory_space<vmem>>, vector<32x128xbf16>
    %cst_8 = arith.constant 0.000000e+00 : f32
    %9 = vector.broadcast %cst_8 : f32 to vector<8x32xf32>
    %cst_9 = arith.constant 0.000000e+00 : f32
    %10 = vector.broadcast %cst_9 : f32 to vector<8x32xf32>
    %11 = vector.extract_strided_slice %7 {offsets = [0, 0, 0], sizes = [8, 1, 128], strides = [1, 1, 1]} : vector<8x8x128xf32> to vector<8x1x128xf32>
    %12 = vector.shape_cast %11 : vector<8x1x128xf32> to vector<8x128xf32>
    %13 = arith.truncf %9 : vector<8x32xf32> to vector<8x32xbf16>
    %cst_10 = arith.constant dense<0.000000e+00> : vector<8x128xf32>
    %14 = tpu.matmul %13, %8, %cst_10 {dimension_numbers = #tpu.dot_dimension_numbers<[1], [0], [0], [1], [0, 0, 1, 1], [], []>} : vector<8x32xbf16>, vector<32x128xbf16>, vector<8x128xf32> -> vector<8x128xf32>
    %15 = arith.addf %12, %14 : vector<8x128xf32>
    %16 = arith.negf %15 : vector<8x128xf32>
    %17 = math.exp %16 : vector<8x128xf32>
    %cst_11 = arith.constant 1.000000e+00 : f32
    %18 = vector.broadcast %cst_11 : f32 to vector<8x128xf32>
    %19 = arith.addf %18, %17 : vector<8x128xf32>
    %20 = arith.divf %18, %19 : vector<8x128xf32>
    %21 = math.tanh %15 : vector<8x128xf32>
    %22 = vector.extract_strided_slice %20 {offsets = [0, 0], sizes = [8, 32], strides = [1, 1]} : vector<8x128xf32> to vector<8x32xf32>
    %23 = vector.extract_strided_slice %20 {offsets = [0, 32], sizes = [8, 32], strides = [1, 1]} : vector<8x128xf32> to vector<8x32xf32>
    %24 = vector.extract_strided_slice %21 {offsets = [0, 64], sizes = [8, 32], strides = [1, 1]} : vector<8x128xf32> to vector<8x32xf32>
    %25 = vector.extract_strided_slice %20 {offsets = [0, 96], sizes = [8, 32], strides = [1, 1]} : vector<8x128xf32> to vector<8x32xf32>
    %26 = arith.mulf %23, %10 : vector<8x32xf32>
    %27 = arith.mulf %22, %24 : vector<8x32xf32>
    %28 = arith.addf %26, %27 : vector<8x32xf32>
    %29 = math.tanh %28 : vector<8x32xf32>
    %30 = arith.mulf %25, %29 : vector<8x32xf32>
    %31 = vector.extract_strided_slice %7 {offsets = [0, 1, 0], sizes = [8, 1, 128], strides = [1, 1, 1]} : vector<8x8x128xf32> to vector<8x1x128xf32>
    %32 = vector.shape_cast %31 : vector<8x1x128xf32> to vector<8x128xf32>
    %33 = arith.truncf %30 : vector<8x32xf32> to vector<8x32xbf16>
    %cst_12 = arith.constant dense<0.000000e+00> : vector<8x128xf32>
    %34 = tpu.matmul %33, %8, %cst_12 {dimension_numbers = #tpu.dot_dimension_numbers<[1], [0], [0], [1], [0, 0, 1, 1], [], []>} : vector<8x32xbf16>, vector<32x128xbf16>, vector<8x128xf32> -> vector<8x128xf32>
    %35 = arith.addf %32, %34 : vector<8x128xf32>
    %36 = arith.negf %35 : vector<8x128xf32>
    %37 = math.exp %36 : vector<8x128xf32>
    %cst_13 = arith.constant 1.000000e+00 : f32
    %38 = vector.broadcast %cst_13 : f32 to vector<8x128xf32>
    %39 = arith.addf %38, %37 : vector<8x128xf32>
    %40 = arith.divf %38, %39 : vector<8x128xf32>
    %41 = math.tanh %35 : vector<8x128xf32>
    %42 = vector.extract_strided_slice %40 {offsets = [0, 0], sizes = [8, 32], strides = [1, 1]} : vector<8x128xf32> to vector<8x32xf32>
    %43 = vector.extract_strided_slice %40 {offsets = [0, 32], sizes = [8, 32], strides = [1, 1]} : vector<8x128xf32> to vector<8x32xf32>
    %44 = vector.extract_strided_slice %41 {offsets = [0, 64], sizes = [8, 32], strides = [1, 1]} : vector<8x128xf32> to vector<8x32xf32>
    %45 = vector.extract_strided_slice %40 {offsets = [0, 96], sizes = [8, 32], strides = [1, 1]} : vector<8x128xf32> to vector<8x32xf32>
    %46 = arith.mulf %43, %28 : vector<8x32xf32>
    %47 = arith.mulf %42, %44 : vector<8x32xf32>
    %48 = arith.addf %46, %47 : vector<8x32xf32>
    %49 = math.tanh %48 : vector<8x32xf32>
    %50 = arith.mulf %45, %49 : vector<8x32xf32>
    %51 = vector.extract_strided_slice %7 {offsets = [0, 2, 0], sizes = [8, 1, 128], strides = [1, 1, 1]} : vector<8x8x128xf32> to vector<8x1x128xf32>
    %52 = vector.shape_cast %51 : vector<8x1x128xf32> to vector<8x128xf32>
    %53 = arith.truncf %50 : vector<8x32xf32> to vector<8x32xbf16>
    %cst_14 = arith.constant dense<0.000000e+00> : vector<8x128xf32>
    %54 = tpu.matmul %53, %8, %cst_14 {dimension_numbers = #tpu.dot_dimension_numbers<[1], [0], [0], [1], [0, 0, 1, 1], [], []>} : vector<8x32xbf16>, vector<32x128xbf16>, vector<8x128xf32> -> vector<8x128xf32>
    %55 = arith.addf %52, %54 : vector<8x128xf32>
    %56 = arith.negf %55 : vector<8x128xf32>
    %57 = math.exp %56 : vector<8x128xf32>
    %cst_15 = arith.constant 1.000000e+00 : f32
    %58 = vector.broadcast %cst_15 : f32 to vector<8x128xf32>
    %59 = arith.addf %58, %57 : vector<8x128xf32>
    %60 = arith.divf %58, %59 : vector<8x128xf32>
    %61 = math.tanh %55 : vector<8x128xf32>
    %62 = vector.extract_strided_slice %60 {offsets = [0, 0], sizes = [8, 32], strides = [1, 1]} : vector<8x128xf32> to vector<8x32xf32>
    %63 = vector.extract_strided_slice %60 {offsets = [0, 32], sizes = [8, 32], strides = [1, 1]} : vector<8x128xf32> to vector<8x32xf32>
    %64 = vector.extract_strided_slice %61 {offsets = [0, 64], sizes = [8, 32], strides = [1, 1]} : vector<8x128xf32> to vector<8x32xf32>
    %65 = vector.extract_strided_slice %60 {offsets = [0, 96], sizes = [8, 32], strides = [1, 1]} : vector<8x128xf32> to vector<8x32xf32>
    %66 = arith.mulf %63, %48 : vector<8x32xf32>
    %67 = arith.mulf %62, %64 : vector<8x32xf32>
    %68 = arith.addf %66, %67 : vector<8x32xf32>
    %69 = math.tanh %68 : vector<8x32xf32>
    %70 = arith.mulf %65, %69 : vector<8x32xf32>
    %71 = vector.extract_strided_slice %7 {offsets = [0, 3, 0], sizes = [8, 1, 128], strides = [1, 1, 1]} : vector<8x8x128xf32> to vector<8x1x128xf32>
    %72 = vector.shape_cast %71 : vector<8x1x128xf32> to vector<8x128xf32>
    %73 = arith.truncf %70 : vector<8x32xf32> to vector<8x32xbf16>
    %cst_16 = arith.constant dense<0.000000e+00> : vector<8x128xf32>
    %74 = tpu.matmul %73, %8, %cst_16 {dimension_numbers = #tpu.dot_dimension_numbers<[1], [0], [0], [1], [0, 0, 1, 1], [], []>} : vector<8x32xbf16>, vector<32x128xbf16>, vector<8x128xf32> -> vector<8x128xf32>
    %75 = arith.addf %72, %74 : vector<8x128xf32>
    %76 = arith.negf %75 : vector<8x128xf32>
    %77 = math.exp %76 : vector<8x128xf32>
    %cst_17 = arith.constant 1.000000e+00 : f32
    %78 = vector.broadcast %cst_17 : f32 to vector<8x128xf32>
    %79 = arith.addf %78, %77 : vector<8x128xf32>
    %80 = arith.divf %78, %79 : vector<8x128xf32>
    %81 = math.tanh %75 : vector<8x128xf32>
    %82 = vector.extract_strided_slice %80 {offsets = [0, 0], sizes = [8, 32], strides = [1, 1]} : vector<8x128xf32> to vector<8x32xf32>
    %83 = vector.extract_strided_slice %80 {offsets = [0, 32], sizes = [8, 32], strides = [1, 1]} : vector<8x128xf32> to vector<8x32xf32>
    %84 = vector.extract_strided_slice %81 {offsets = [0, 64], sizes = [8, 32], strides = [1, 1]} : vector<8x128xf32> to vector<8x32xf32>
    %85 = vector.extract_strided_slice %80 {offsets = [0, 96], sizes = [8, 32], strides = [1, 1]} : vector<8x128xf32> to vector<8x32xf32>
    %86 = arith.mulf %83, %68 : vector<8x32xf32>
    %87 = arith.mulf %82, %84 : vector<8x32xf32>
    %88 = arith.addf %86, %87 : vector<8x32xf32>
    %89 = math.tanh %88 : vector<8x32xf32>
    %90 = arith.mulf %85, %89 : vector<8x32xf32>
    %91 = vector.extract_strided_slice %7 {offsets = [0, 4, 0], sizes = [8, 1, 128], strides = [1, 1, 1]} : vector<8x8x128xf32> to vector<8x1x128xf32>
    %92 = vector.shape_cast %91 : vector<8x1x128xf32> to vector<8x128xf32>
    %93 = arith.truncf %90 : vector<8x32xf32> to vector<8x32xbf16>
    %cst_18 = arith.constant dense<0.000000e+00> : vector<8x128xf32>
    %94 = tpu.matmul %93, %8, %cst_18 {dimension_numbers = #tpu.dot_dimension_numbers<[1], [0], [0], [1], [0, 0, 1, 1], [], []>} : vector<8x32xbf16>, vector<32x128xbf16>, vector<8x128xf32> -> vector<8x128xf32>
    %95 = arith.addf %92, %94 : vector<8x128xf32>
    %96 = arith.negf %95 : vector<8x128xf32>
    %97 = math.exp %96 : vector<8x128xf32>
    %cst_19 = arith.constant 1.000000e+00 : f32
    %98 = vector.broadcast %cst_19 : f32 to vector<8x128xf32>
    %99 = arith.addf %98, %97 : vector<8x128xf32>
    %100 = arith.divf %98, %99 : vector<8x128xf32>
    %101 = math.tanh %95 : vector<8x128xf32>
    %102 = vector.extract_strided_slice %100 {offsets = [0, 0], sizes = [8, 32], strides = [1, 1]} : vector<8x128xf32> to vector<8x32xf32>
    %103 = vector.extract_strided_slice %100 {offsets = [0, 32], sizes = [8, 32], strides = [1, 1]} : vector<8x128xf32> to vector<8x32xf32>
    %104 = vector.extract_strided_slice %101 {offsets = [0, 64], sizes = [8, 32], strides = [1, 1]} : vector<8x128xf32> to vector<8x32xf32>
    %105 = vector.extract_strided_slice %100 {offsets = [0, 96], sizes = [8, 32], strides = [1, 1]} : vector<8x128xf32> to vector<8x32xf32>
    %106 = arith.mulf %103, %88 : vector<8x32xf32>
    %107 = arith.mulf %102, %104 : vector<8x32xf32>
    %108 = arith.addf %106, %107 : vector<8x32xf32>
    %109 = math.tanh %108 : vector<8x32xf32>
    %110 = arith.mulf %105, %109 : vector<8x32xf32>
    %111 = vector.extract_strided_slice %7 {offsets = [0, 5, 0], sizes = [8, 1, 128], strides = [1, 1, 1]} : vector<8x8x128xf32> to vector<8x1x128xf32>
    %112 = vector.shape_cast %111 : vector<8x1x128xf32> to vector<8x128xf32>
    %113 = arith.truncf %110 : vector<8x32xf32> to vector<8x32xbf16>
    %cst_20 = arith.constant dense<0.000000e+00> : vector<8x128xf32>
    %114 = tpu.matmul %113, %8, %cst_20 {dimension_numbers = #tpu.dot_dimension_numbers<[1], [0], [0], [1], [0, 0, 1, 1], [], []>} : vector<8x32xbf16>, vector<32x128xbf16>, vector<8x128xf32> -> vector<8x128xf32>
    %115 = arith.addf %112, %114 : vector<8x128xf32>
    %116 = arith.negf %115 : vector<8x128xf32>
    %117 = math.exp %116 : vector<8x128xf32>
    %cst_21 = arith.constant 1.000000e+00 : f32
    %118 = vector.broadcast %cst_21 : f32 to vector<8x128xf32>
    %119 = arith.addf %118, %117 : vector<8x128xf32>
    %120 = arith.divf %118, %119 : vector<8x128xf32>
    %121 = math.tanh %115 : vector<8x128xf32>
    %122 = vector.extract_strided_slice %120 {offsets = [0, 0], sizes = [8, 32], strides = [1, 1]} : vector<8x128xf32> to vector<8x32xf32>
    %123 = vector.extract_strided_slice %120 {offsets = [0, 32], sizes = [8, 32], strides = [1, 1]} : vector<8x128xf32> to vector<8x32xf32>
    %124 = vector.extract_strided_slice %121 {offsets = [0, 64], sizes = [8, 32], strides = [1, 1]} : vector<8x128xf32> to vector<8x32xf32>
    %125 = vector.extract_strided_slice %120 {offsets = [0, 96], sizes = [8, 32], strides = [1, 1]} : vector<8x128xf32> to vector<8x32xf32>
    %126 = arith.mulf %123, %108 : vector<8x32xf32>
    %127 = arith.mulf %122, %124 : vector<8x32xf32>
    %128 = arith.addf %126, %127 : vector<8x32xf32>
    %129 = math.tanh %128 : vector<8x32xf32>
    %130 = arith.mulf %125, %129 : vector<8x32xf32>
    %131 = vector.extract_strided_slice %7 {offsets = [0, 6, 0], sizes = [8, 1, 128], strides = [1, 1, 1]} : vector<8x8x128xf32> to vector<8x1x128xf32>
    %132 = vector.shape_cast %131 : vector<8x1x128xf32> to vector<8x128xf32>
    %133 = arith.truncf %130 : vector<8x32xf32> to vector<8x32xbf16>
    %cst_22 = arith.constant dense<0.000000e+00> : vector<8x128xf32>
    %134 = tpu.matmul %133, %8, %cst_22 {dimension_numbers = #tpu.dot_dimension_numbers<[1], [0], [0], [1], [0, 0, 1, 1], [], []>} : vector<8x32xbf16>, vector<32x128xbf16>, vector<8x128xf32> -> vector<8x128xf32>
    %135 = arith.addf %132, %134 : vector<8x128xf32>
    %136 = arith.negf %135 : vector<8x128xf32>
    %137 = math.exp %136 : vector<8x128xf32>
    %cst_23 = arith.constant 1.000000e+00 : f32
    %138 = vector.broadcast %cst_23 : f32 to vector<8x128xf32>
    %139 = arith.addf %138, %137 : vector<8x128xf32>
    %140 = arith.divf %138, %139 : vector<8x128xf32>
    %141 = math.tanh %135 : vector<8x128xf32>
    %142 = vector.extract_strided_slice %140 {offsets = [0, 0], sizes = [8, 32], strides = [1, 1]} : vector<8x128xf32> to vector<8x32xf32>
    %143 = vector.extract_strided_slice %140 {offsets = [0, 32], sizes = [8, 32], strides = [1, 1]} : vector<8x128xf32> to vector<8x32xf32>
    %144 = vector.extract_strided_slice %141 {offsets = [0, 64], sizes = [8, 32], strides = [1, 1]} : vector<8x128xf32> to vector<8x32xf32>
    %145 = vector.extract_strided_slice %140 {offsets = [0, 96], sizes = [8, 32], strides = [1, 1]} : vector<8x128xf32> to vector<8x32xf32>
    %146 = arith.mulf %143, %128 : vector<8x32xf32>
    %147 = arith.mulf %142, %144 : vector<8x32xf32>
    %148 = arith.addf %146, %147 : vector<8x32xf32>
    %149 = math.tanh %148 : vector<8x32xf32>
    %150 = arith.mulf %145, %149 : vector<8x32xf32>
    %151 = vector.extract_strided_slice %7 {offsets = [0, 7, 0], sizes = [8, 1, 128], strides = [1, 1, 1]} : vector<8x8x128xf32> to vector<8x1x128xf32>
    %152 = vector.shape_cast %151 : vector<8x1x128xf32> to vector<8x128xf32>
    %153 = arith.truncf %150 : vector<8x32xf32> to vector<8x32xbf16>
    %cst_24 = arith.constant dense<0.000000e+00> : vector<8x128xf32>
    %154 = tpu.matmul %153, %8, %cst_24 {dimension_numbers = #tpu.dot_dimension_numbers<[1], [0], [0], [1], [0, 0, 1, 1], [], []>} : vector<8x32xbf16>, vector<32x128xbf16>, vector<8x128xf32> -> vector<8x128xf32>
    %155 = arith.addf %152, %154 : vector<8x128xf32>
    %156 = arith.negf %155 : vector<8x128xf32>
    %157 = math.exp %156 : vector<8x128xf32>
    %cst_25 = arith.constant 1.000000e+00 : f32
    %158 = vector.broadcast %cst_25 : f32 to vector<8x128xf32>
    %159 = arith.addf %158, %157 : vector<8x128xf32>
    %160 = arith.divf %158, %159 : vector<8x128xf32>
    %161 = math.tanh %155 : vector<8x128xf32>
    %162 = vector.extract_strided_slice %160 {offsets = [0, 0], sizes = [8, 32], strides = [1, 1]} : vector<8x128xf32> to vector<8x32xf32>
    %163 = vector.extract_strided_slice %160 {offsets = [0, 32], sizes = [8, 32], strides = [1, 1]} : vector<8x128xf32> to vector<8x32xf32>
    %164 = vector.extract_strided_slice %161 {offsets = [0, 64], sizes = [8, 32], strides = [1, 1]} : vector<8x128xf32> to vector<8x32xf32>
    %165 = vector.extract_strided_slice %160 {offsets = [0, 96], sizes = [8, 32], strides = [1, 1]} : vector<8x128xf32> to vector<8x32xf32>
    %166 = arith.mulf %163, %148 : vector<8x32xf32>
    %167 = arith.mulf %162, %164 : vector<8x32xf32>
    %168 = arith.addf %166, %167 : vector<8x32xf32>
    %169 = math.tanh %168 : vector<8x32xf32>
    %170 = arith.mulf %165, %169 : vector<8x32xf32>
    %171 = vector.shape_cast %30 : vector<8x32xf32> to vector<8x1x32xf32>
    %172 = vector.shape_cast %50 : vector<8x32xf32> to vector<8x1x32xf32>
    %173 = vector.shape_cast %70 : vector<8x32xf32> to vector<8x1x32xf32>
    %174 = vector.shape_cast %90 : vector<8x32xf32> to vector<8x1x32xf32>
    %175 = vector.shape_cast %110 : vector<8x32xf32> to vector<8x1x32xf32>
    %176 = vector.shape_cast %130 : vector<8x32xf32> to vector<8x1x32xf32>
    %177 = vector.shape_cast %150 : vector<8x32xf32> to vector<8x1x32xf32>
    %178 = vector.shape_cast %170 : vector<8x32xf32> to vector<8x1x32xf32>
    %179 = tpu.concatenate %171, %172, %173, %174, %175, %176, %177, %178 in 1 : vector<8x1x32xf32>, vector<8x1x32xf32>, vector<8x1x32xf32>, vector<8x1x32xf32>, vector<8x1x32xf32>, vector<8x1x32xf32>, vector<8x1x32xf32>, vector<8x1x32xf32> -> vector<8x8x32xf32>
    %c0_26 = arith.constant 0 : index
    %c0_27 = arith.constant 0 : index
    %c0_28 = arith.constant 0 : index
    %180 = vector.load %arg4[%c0_26, %c0_27, %c0_28] : memref<8x8x32xf32, #tpu.memory_space<vmem>>, vector<8x8x32xf32>
    tpu.vector_store %arg4[%c0_26, %c0_27, %c0_28], %179 {strides = array<i32>} : memref<8x8x32xf32, #tpu.memory_space<vmem>>, vector<8x8x32xf32>,
    return
  }
}

</mosaic_0001>

<llo_original>
// kernel: tpu_custom_call.1
$region0: #{tpu_custom_call.1}
  #allocation0 [shape = 'u32[]', space=smem, size = 0x4, offset = 0x4, fixed_abs, tag = 'smem constant byte address 0x4 - core index']
  #allocation1 [shape = 'u32[144,128]{1,0:T(1,128)}', space=vmem, size = 0x12000, scoped, tag = 'internal scratch']
  %s0 = inlined_call_operand.hbm [shape: bf16[8,8,32], index: 0, kind: input, shape index: {}]
  %s1 = inlined_call_operand.hbm [shape: bf16[32,128], index: 1, kind: input, shape index: {}]
  %s2 = inlined_call_operand.hbm [shape: bf16[32,128], index: 2, kind: input, shape index: {}]
  %s3 = inlined_call_operand.vmem [shape: f32[1,128], index: 3, kind: input, shape index: {}]
  %s4 = inlined_call_operand.hbm [shape: f32[8,8,32], index: 4, kind: output, shape index: {}]
  %s5 = sld [smem:[#allocation0]]
  $region38: #{tpu_custom_call.1} parent=0
    _
  %s7 = ssub.s32 1, %s5
  %s8 = scalar_select 0, %s7, %s5
  $region1: #{tpu_custom_call.1} parent=0
    #allocation2 [shape = 'u8[16384]{0}', space=vmem, size = 0x4000, scoped, tag = 'input window, operand 0, single buffered']
    #allocation3 [shape = 's32[1]{0}', space=sflag, size = 0x4, scoped, tag = 'scoped memory for tpu_custom_call.1']
    #allocation4 [shape = 's32[1]{0}', space=sflag, size = 0x4, scoped, tag = 'scoped memory for tpu_custom_call.1']
    #allocation5 [shape = 'u8[8192]{0}', space=vmem, size = 0x2000, scoped, tag = 'input window, operand 1, single buffered']
    #allocation6 [shape = 's32[1]{0}', space=sflag, size = 0x4, scoped, tag = 'scoped memory for tpu_custom_call.1']
    #allocation7 [shape = 'u8[8192]{0}', space=vmem, size = 0x2000, scoped, tag = 'input window, operand 2, single buffered']
    #allocation8 [shape = 'u8[32768]{0}', space=vmem, size = 0x8000, scoped, tag = 'output window, operand 0, single buffered']
    %9 = vsyncpa [#allocation3], 0
    %10 = vsyncpa [#allocation6], 0
    %11 = vsyncpa [#allocation4], 0
    // Predicated region
    $region2: #{tpu_custom_call.1} parent=1 // pred_check
      _
    $region3: #{tpu_custom_call.1} parent=1 // pred_check_branch
      %13 = sbr.rel (0) target = $region5
    $region4: #{tpu_custom_call.1} parent=1 // pred_region
      %s15 = ssub.s32 512, 512
      %16 = vsyncadd [#allocation3], %s15
      %s17 = sshll.u32 [#allocation2], 4
      %s18 = int_to_ptr.vmem [resolvable:$true] %s17
      %23 = dma.hbm_to_vmem [thread:$0]  %s0, 512, %s18, [#allocation3], 64, 64, 4
    $region5: #{tpu_custom_call.1} parent=1 // pred_fallthru
      _
    // Predicated region
    $region6: #{tpu_custom_call.1} parent=1 // pred_check
      _
    $region7: #{tpu_custom_call.1} parent=1 // pred_check_branch
      %25 = sbr.rel (0) target = $region9
    $region8: #{tpu_custom_call.1} parent=1 // pred_region
      %s27 = ssub.s32 256, 256
      %28 = vsyncadd [#allocation6], %s27
      %s29 = sshll.u32 [#allocation5], 4
      %s30 = int_to_ptr.vmem [resolvable:$true] %s29
      %35 = dma.hbm_to_vmem [thread:$0]  %s1, 256, %s30, [#allocation6], 64, 64, 4
    $region9: #{tpu_custom_call.1} parent=1 // pred_fallthru
      _
    // Predicated region
    $region10: #{tpu_custom_call.1} parent=1 // pred_check
      _
    $region11: #{tpu_custom_call.1} parent=1 // pred_check_branch
      %37 = sbr.rel (0) target = $region13
    $region12: #{tpu_custom_call.1} parent=1 // pred_region
      %s39 = ssub.s32 256, 256
      %40 = vsyncadd [#allocation6], %s39
      %s41 = sshll.u32 [#allocation7], 4
      %s42 = int_to_ptr.vmem [resolvable:$true] %s41
      %47 = dma.hbm_to_vmem [thread:$0]  %s2, 256, %s42, [#allocation6], 64, 64, 4
    $region13: #{tpu_custom_call.1} parent=1 // pred_fallthru
      _
    // Predicated region
    $region14: #{tpu_custom_call.1} parent=1 // pred_check
      _
    $region15: #{tpu_custom_call.1} parent=1 // pred_check_branch
      %49 = sbr.rel (0) target = $region17
    $region16: #{tpu_custom_call.1} parent=1 // pred_region
      _
    $region17: #{tpu_custom_call.1} parent=1 // pred_fallthru
      _
    // Predicated region
    $region18: #{tpu_custom_call.1} parent=1 // pred_check
      _
    $region19: #{tpu_custom_call.1} parent=1 // pred_check_branch
      %51 = sbr.rel (0) target = $region21
    $region20: #{tpu_custom_call.1} parent=1 // pred_region
      %52 = dma.done [#allocation3], 512
    $region21: #{tpu_custom_call.1} parent=1 // pred_fallthru
      _
    // Predicated region
    $region22: #{tpu_custom_call.1} parent=1 // pred_check
      _
    $region23: #{tpu_custom_call.1} parent=1 // pred_check_branch
      %54 = sbr.rel (0) target = $region25
    $region24: #{tpu_custom_call.1} parent=1 // pred_region
      %55 = dma.done [#allocation6], 256
    $region25: #{tpu_custom_call.1} parent=1 // pred_fallthru
      _
    // Predicated region
    $region26: #{tpu_custom_call.1} parent=1 // pred_check
      _
    $region27: #{tpu_custom_call.1} parent=1 // pred_check_branch
      %57 = sbr.rel (0) target = $region29
    $region28: #{tpu_custom_call.1} parent=1 // pred_region
      %58 = dma.done [#allocation6], 256
    $region29: #{tpu_custom_call.1} parent=1 // pred_fallthru
      _
    %v60 = vld [vmem:[#allocation2] sm:$0xf]
    %v61 = vld [vmem:[#allocation2 + $0x4] sm:$0xf]
    %v62 = vld [vmem:[#allocation2 + $0x8] sm:$0xf]
    %v63 = vld [vmem:[#allocation2 + $0xc] sm:$0xf]
    %v64 = vld [vmem:[#allocation2 + $0x10] sm:$0xf]
    %v65 = vld [vmem:[#allocation2 + $0x14] sm:$0xf]
    %v66 = vld [vmem:[#allocation2 + $0x18] sm:$0xf]
    %v67 = vld [vmem:[#allocation2 + $0x1c] sm:$0xf]
    %v68 = vld [vmem:[#allocation5] sm:$0xf]
    %v69 = vld [vmem:[#allocation5 + $0x4] sm:$0xf]
    %v70 = vld [vmem:[#allocation5 + $0x8] sm:$0xf]
    %v71 = vld [vmem:[#allocation5 + $0xc] sm:$0xf]
    %v72 = vld [vmem:[%s3] sm:$0x1]
    %v74 = vlaneseq
    %v75 = vshrl.u32 %v74, 7
    %v76 = vsub.s32 0, %v75
    %v77 = vrot.slane %v72, %v76
    %v87 = vunpack.c.l.b16 %v60
    %v88 = vunpack.c.l.b16 %v61
    %v89 = vunpack.c.l.b16 %v62
    %v90 = vunpack.c.l.b16 %v63
    %v91 = vunpack.c.l.b16 %v64
    %v92 = vunpack.c.l.b16 %v65
    %v93 = vunpack.c.l.b16 %v66
    %v94 = vunpack.c.l.b16 %v67
    %v95 = vpack.c.b16 %v88, %v87
    %v96 = vpack.c.b16 %v90, %v89
    %v97 = vpack.c.b16 %v92, %v91
    %v98 = vpack.c.b16 %v94, %v93
    %v103 = vunpack.c.l.b16 %v68
    %v104 = vunpack.c.l.b16 %v69
    %v105 = vunpack.c.l.b16 %v70
    %v106 = vunpack.c.l.b16 %v71
    %v107 = vpack.c.b16 %v104, %v103
    %v108 = vpack.c.b16 %v106, %v105
    %vm111 = vcmask 261120
    %v113 = vsel %vm111, %v95, 0
    %v116 = vsel %vm111, %v96, 0
    %v119 = vsel %vm111, %v97, 0
    %v122 = vsel %vm111, %v98, 0
    %124 = vmatprep.subr.bf16.mxu0 0
    %125 = vmatpush1.bf16.msra.mxu0 %v107
    %126 = vmatprep.subr.bf16.mxu0 0
    %127 = vmatpush1.bf16.msra.mxu0 %v108
    %128 = vmatprep.subr.bf16.mxu0 0
    %129 = vmatpush1.bf16.msra.mxu0 0
    %130 = vmatprep.subr.bf16.mxu0 0
    %131 = vmatpush1.bf16.msra.mxu0 0
    %132 = vmatprep.subr.bf16.mxu0 0
    %133 = vmatpush1.bf16.msra.mxu0 0
    %134 = vmatprep.subr.bf16.mxu0 0
    %135 = vmatpush1.bf16.msra.mxu0 0
    %136 = vmatprep.subr.bf16.mxu0 0
    %137 = vmatpush1.bf16.msra.mxu0 0
    %138 = vmatprep.subr.bf16.mxu0 0
    %139 = vmatpush1.bf16.msra.mxu0 0
    %140 = vmatprep.subr.bf16.mxu0 0
    %141 = vmatpush1.bf16.msra.mxu0 0
    %142 = vmatprep.subr.bf16.mxu0 0
    %143 = vmatpush1.bf16.msra.mxu0 0
    %144 = vmatprep.subr.bf16.mxu0 0
    %145 = vmatpush1.bf16.msra.mxu0 0
    %146 = vmatprep.subr.bf16.mxu0 0
    %147 = vmatpush1.bf16.msra.mxu0 0
    %148 = vmatprep.subr.bf16.mxu0 0
    %149 = vmatpush1.bf16.msra.mxu0 0
    %150 = vmatprep.subr.bf16.mxu0 0
    %151 = vmatpush1.bf16.msra.mxu0 0
    %152 = vmatprep.subr.bf16.mxu0 0
    %153 = vmatpush1.bf16.msra.mxu0 0
    %154 = vmatprep.subr.bf16.mxu0 0
    %155 = vmatpush1.bf16.msra.mxu0 0
    %156 = vmatprep.mubr.bf16.mxu0 0
    %157 = vmatmul.mubr.bf16.gmra.mrb[0].mxu0 %v113
    %v158 = vpop.f32.mrb[0].mxu0
    %v159 = vadd.f32 %v77, %v158
    %v160 = vpop.f32.mrb[0].mxu0
    %v161 = vpop.f32.mrb[0].mxu0
    %v162 = vadd.f32 %v77, %v161
    %v163 = vpop.f32.mrb[0].mxu0
    %164 = vmatprep.mubr.bf16.mxu0 0
    %165 = vmatmul.mubr.bf16.gmra.mrb[0].mxu0 %v116
    %v166 = vpop.f32.mrb[0].mxu0
    %v167 = vadd.f32 %v77, %v166
    %v168 = vpop.f32.mrb[0].mxu0
    %v169 = vpop.f32.mrb[0].mxu0
    %v170 = vadd.f32 %v77, %v169
    %v171 = vpop.f32.mrb[0].mxu0
    %172 = vmatprep.mubr.bf16.mxu0 0
    %173 = vmatmul.mubr.bf16.gmra.mrb[0].mxu0 %v119
    %v174 = vpop.f32.mrb[0].mxu0
    %v175 = vadd.f32 %v77, %v174
    %v176 = vpop.f32.mrb[0].mxu0
    %v177 = vpop.f32.mrb[0].mxu0
    %v178 = vadd.f32 %v77, %v177
    %v179 = vpop.f32.mrb[0].mxu0
    %180 = vmatprep.mubr.bf16.mxu0 0
    %181 = vmatmul.mubr.bf16.gmra.mrb[0].mxu0 %v122
    %v182 = vpop.f32.mrb[0].mxu0
    %v183 = vadd.f32 %v77, %v182
    %v184 = vpop.f32.mrb[0].mxu0
    %v185 = vpop.f32.mrb[0].mxu0
    %v186 = vadd.f32 %v77, %v185
    %v187 = vpop.f32.mrb[0].mxu0
    %188 = vdwg.mxu0
    %v189 = vld [vmem:[#allocation7] sm:$0xf]
    %v190 = vld [vmem:[#allocation7 + $0x4] sm:$0xf]
    %v191 = vld [vmem:[#allocation7 + $0x8] sm:$0xf]
    %v192 = vld [vmem:[#allocation7 + $0xc] sm:$0xf]
    %v197 = vunpack.c.l.b16 %v189
    %v198 = vunpack.c.l.b16 %v190
    %v199 = vunpack.c.l.b16 %v191
    %v200 = vunpack.c.l.b16 %v192
    %v201 = vpack.c.b16 %v198, %v197
    %v202 = vpack.c.b16 %v200, %v199
    %v206 = vsel %vm111, 0, 0
    %208 = vmatprep.subr.bf16.mxu0 0
    %209 = vmatpush1.bf16.msra.mxu0 %v201
    %210 = vmatprep.subr.bf16.mxu0 0
    %211 = vmatpush1.bf16.msra.mxu0 %v202
    %212 = vmatprep.subr.bf16.mxu0 0
    %213 = vmatpush1.bf16.msra.mxu0 0
    %214 = vmatprep.subr.bf16.mxu0 0
    %215 = vmatpush1.bf16.msra.mxu0 0
    %216 = vmatprep.subr.bf16.mxu0 0
    %217 = vmatpush1.bf16.msra.mxu0 0
    %218 = vmatprep.subr.bf16.mxu0 0
    %219 = vmatpush1.bf16.msra.mxu0 0
    %220 = vmatprep.subr.bf16.mxu0 0
    %221 = vmatpush1.bf16.msra.mxu0 0
    %222 = vmatprep.subr.bf16.mxu0 0
    %223 = vmatpush1.bf16.msra.mxu0 0
    %224 = vmatprep.subr.bf16.mxu0 0
    %225 = vmatpush1.bf16.msra.mxu0 0
    %226 = vmatprep.subr.bf16.mxu0 0
    %227 = vmatpush1.bf16.msra.mxu0 0
    %228 = vmatprep.subr.bf16.mxu0 0
    %229 = vmatpush1.bf16.msra.mxu0 0
    %230 = vmatprep.subr.bf16.mxu0 0
    %231 = vmatpush1.bf16.msra.mxu0 0
    %232 = vmatprep.subr.bf16.mxu0 0
    %233 = vmatpush1.bf16.msra.mxu0 0
    %234 = vmatprep.subr.bf16.mxu0 0
    %235 = vmatpush1.bf16.msra.mxu0 0
    %236 = vmatprep.subr.bf16.mxu0 0
    %237 = vmatpush1.bf16.msra.mxu0 0
    %238 = vmatprep.subr.bf16.mxu0 0
    %239 = vmatpush1.bf16.msra.mxu0 0
    %240 = vmatprep.mubr.bf16.mxu0 0
    %241 = vmatmul.mubr.bf16.gmra.mrb[0].mxu0 %v206
    %v242 = vpop.f32.mrb[0].mxu0
    %v243 = vadd.f32 0.0, %v242
    %v244 = vpop.f32.mrb[0].mxu0
    %v245 = vpop.f32.mrb[0].mxu0
    %v246 = vpop.f32.mrb[0].mxu0
    %247 = vdwg.mxu0
    %v249 = vrot.slane %v243, 1
    %v250 = vrot.slane %v243, 2
    %v251 = vrot.slane %v243, 3
    %v252 = vrot.slane %v243, 4
    %v253 = vrot.slane %v243, 5
    %v254 = vrot.slane %v243, 6
    %v255 = vrot.slane %v243, 7
    %v264 = vadd.f32 %v159, %v243
    %v265 = vadd.f32 %v162, %v249
    %v266 = vadd.f32 %v167, %v250
    %v267 = vadd.f32 %v170, %v251
    %v268 = vadd.f32 %v175, %v252
    %v269 = vadd.f32 %v178, %v253
    %v270 = vadd.f32 %v183, %v254
    %v271 = vadd.f32 %v186, %v255
    %v272 = vxor.u32 %v264, 2147483648
    %v273 = vxor.u32 %v265, 2147483648
    %v274 = vxor.u32 %v266, 2147483648
    %v275 = vxor.u32 %v267, 2147483648
    %v276 = vxor.u32 %v268, 2147483648
    %v277 = vxor.u32 %v269, 2147483648
    %v278 = vxor.u32 %v270, 2147483648
    %v279 = vxor.u32 %v271, 2147483648
    %v280 = vmul.f32 %v272, 1.442695
    %v281 = vpow.pop %v280
    %v282 = vmul.f32 %v273, 1.442695
    %v283 = vpow.pop %v282
    %v284 = vmul.f32 %v274, 1.442695
    %v285 = vpow.pop %v284
    %v286 = vmul.f32 %v275, 1.442695
    %v287 = vpow.pop %v286
    %v288 = vmul.f32 %v276, 1.442695
    %v289 = vpow.pop %v288
    %v290 = vmul.f32 %v277, 1.442695
    %v291 = vpow.pop %v290
    %v292 = vmul.f32 %v278, 1.442695
    %v293 = vpow.pop %v292
    %v294 = vmul.f32 %v279, 1.442695
    %v295 = vpow.pop %v294
    %v296 = vadd.f32 %v281, 1.0
    %v297 = vadd.f32 %v283, 1.0
    %v298 = vadd.f32 %v285, 1.0
    %v299 = vadd.f32 %v287, 1.0
    %v300 = vadd.f32 %v289, 1.0
    %v301 = vadd.f32 %v291, 1.0
    %v302 = vadd.f32 %v293, 1.0
    %v303 = vadd.f32 %v295, 1.0
    %v304 = vrcp.pop %v296
    %v305 = vmul.f32 1.0, %v304
    %v306 = vrcp.pop %v297
    %v307 = vmul.f32 1.0, %v306
    %v308 = vrcp.pop %v298
    %v309 = vmul.f32 1.0, %v308
    %v310 = vrcp.pop %v299
    %v311 = vmul.f32 1.0, %v310
    %v312 = vrcp.pop %v300
    %v313 = vmul.f32 1.0, %v312
    %v314 = vrcp.pop %v301
    %v315 = vmul.f32 1.0, %v314
    %v316 = vrcp.pop %v302
    %v317 = vmul.f32 1.0, %v316
    %v318 = vrcp.pop %v303
    %v319 = vmul.f32 1.0, %v318
    %v320 = vtanh.pop %v264
    %v321 = vtanh.pop %v265
    %v322 = vtanh.pop %v266
    %v323 = vtanh.pop %v267
    %v324 = vtanh.pop %v268
    %v325 = vtanh.pop %v269
    %v326 = vtanh.pop %v270
    %v327 = vtanh.pop %v271
    %v328 = vmul.f32 %v305, 0.0
    %v329 = vmul.f32 %v307, 0.0
    %v330 = vmul.f32 %v309, 0.0
    %v331 = vmul.f32 %v311, 0.0
    %v332 = vmul.f32 %v313, 0.0
    %v333 = vmul.f32 %v315, 0.0
    %v334 = vmul.f32 %v317, 0.0
    %v335 = vmul.f32 %v319, 0.0
    %344 = vrot.lane.b32.xlu0 %v320, 64
    %v345 = vpop.permute.xlu0 %344
    %346 = vrot.lane.b32.xlu0 %v321, 64
    %v347 = vpop.permute.xlu0 %346
    %348 = vrot.lane.b32.xlu0 %v322, 64
    %v349 = vpop.permute.xlu0 %348
    %350 = vrot.lane.b32.xlu0 %v323, 64
    %v351 = vpop.permute.xlu0 %350
    %352 = vrot.lane.b32.xlu0 %v324, 64
    %v353 = vpop.permute.xlu0 %352
    %354 = vrot.lane.b32.xlu0 %v325, 64
    %v355 = vpop.permute.xlu0 %354
    %356 = vrot.lane.b32.xlu0 %v326, 64
    %v357 = vpop.permute.xlu0 %356
    %358 = vrot.lane.b32.xlu0 %v327, 64
    %v359 = vpop.permute.xlu0 %358
    %v368 = vmul.f32 %v305, %v345
    %v369 = vmul.f32 %v307, %v347
    %v370 = vmul.f32 %v309, %v349
    %v371 = vmul.f32 %v311, %v351
    %v372 = vmul.f32 %v313, %v353
    %v373 = vmul.f32 %v315, %v355
    %v374 = vmul.f32 %v317, %v357
    %v375 = vmul.f32 %v319, %v359
    %384 = vrot.lane.b32.xlu0 %v368, 32
    %v385 = vpop.permute.xlu0 %384
    %386 = vrot.lane.b32.xlu0 %v369, 32
    %v387 = vpop.permute.xlu0 %386
    %388 = vrot.lane.b32.xlu0 %v370, 32
    %v389 = vpop.permute.xlu0 %388
    %390 = vrot.lane.b32.xlu0 %v371, 32
    %v391 = vpop.permute.xlu0 %390
    %392 = vrot.lane.b32.xlu0 %v372, 32
    %v393 = vpop.permute.xlu0 %392
    %394 = vrot.lane.b32.xlu0 %v373, 32
    %v395 = vpop.permute.xlu0 %394
    %396 = vrot.lane.b32.xlu0 %v374, 32
    %v397 = vpop.permute.xlu0 %396
    %398 = vrot.lane.b32.xlu0 %v375, 32
    %v399 = vpop.permute.xlu0 %398
    %v408 = vadd.f32 %v328, %v385
    %v409 = vadd.f32 %v329, %v387
    %v410 = vadd.f32 %v330, %v389
    %v411 = vadd.f32 %v331, %v391
    %v412 = vadd.f32 %v332, %v393
    %v413 = vadd.f32 %v333, %v395
    %v414 = vadd.f32 %v334, %v397
    %v415 = vadd.f32 %v335, %v399
    %v416 = vtanh.pop %v408
    %v417 = vtanh.pop %v409
    %v418 = vtanh.pop %v410
    %v419 = vtanh.pop %v411
    %v420 = vtanh.pop %v412
    %v421 = vtanh.pop %v413
    %v422 = vtanh.pop %v414
    %v423 = vtanh.pop %v415
    %432 = vrot.lane.b32.xlu0 %v416, 64
    %v433 = vpop.permute.xlu0 %432
    %434 = vrot.lane.b32.xlu0 %v417, 64
    %v435 = vpop.permute.xlu0 %434
    %436 = vrot.lane.b32.xlu0 %v418, 64
    %v437 = vpop.permute.xlu0 %436
    %438 = vrot.lane.b32.xlu0 %v419, 64
    %v439 = vpop.permute.xlu0 %438
    %440 = vrot.lane.b32.xlu0 %v420, 64
    %v441 = vpop.permute.xlu0 %440
    %442 = vrot.lane.b32.xlu0 %v421, 64
    %v443 = vpop.permute.xlu0 %442
    %444 = vrot.lane.b32.xlu0 %v422, 64
    %v445 = vpop.permute.xlu0 %444
    %446 = vrot.lane.b32.xlu0 %v423, 64
    %v447 = vpop.permute.xlu0 %446
    %v456 = vmul.f32 %v305, %v433
    %v457 = vmul.f32 %v307, %v435
    %v458 = vmul.f32 %v309, %v437
    %v459 = vmul.f32 %v311, %v439
    %v460 = vmul.f32 %v313, %v441
    %v461 = vmul.f32 %v315, %v443
    %v462 = vmul.f32 %v317, %v445
    %v463 = vmul.f32 %v319, %v447
    %v464 = vpack.c.bf16 %v456, %v456
    %v465 = vpack.c.bf16 %v457, %v457
    %v466 = vpack.c.bf16 %v458, %v458
    %v467 = vpack.c.bf16 %v459, %v459
    %v468 = vpack.c.bf16 %v460, %v460
    %v469 = vpack.c.bf16 %v461, %v461
    %v470 = vpack.c.bf16 %v462, %v462
    %v471 = vpack.c.bf16 %v463, %v463
    %v480 = vunpack.c.l.b16 %v464
    %v481 = vunpack.c.l.b16 %v465
    %v482 = vunpack.c.l.b16 %v466
    %v483 = vunpack.c.l.b16 %v467
    %v484 = vunpack.c.l.b16 %v468
    %v485 = vunpack.c.l.b16 %v469
    %v486 = vunpack.c.l.b16 %v470
    %v487 = vunpack.c.l.b16 %v471
    %v488 = vrot.slane %v481, 7
    %vm489 = vcmask 1041409
    %v490 = vsel %vm489, %v488, %v480
    %v491 = vrot.slane %v482, 6
    %vm492 = vcmask 1042434
    %v493 = vsel %vm492, %v491, %v490
    %v494 = vrot.slane %v483, 5
    %vm495 = vcmask 1043459
    %v496 = vsel %vm495, %v494, %v493
    %v497 = vrot.slane %v484, 4
    %vm498 = vcmask 1044484
    %v499 = vsel %vm498, %v497, %v496
    %v500 = vrot.slane %v485, 3
    %vm501 = vcmask 1045509
    %v502 = vsel %vm501, %v500, %v499
    %v503 = vrot.slane %v486, 2
    %vm504 = vcmask 1046534
    %v505 = vsel %vm504, %v503, %v502
    %v506 = vrot.slane %v487, 1
    %vm507 = vcmask 1047559
    %v508 = vsel %vm507, %v506, %v505
    %v509 = vpack.c.b16 %v508, %v508
    %510 = vrot.lane.b32.xlu0 %v509, 32
    %v511 = vpop.permute.xlu0 %510
    %v513 = vsel %vm111, %v511, 0
    %515 = vmatprep.subr.bf16.mxu0 0
    %516 = vmatpush1.bf16.msra.mxu0 %v201
    %517 = vmatprep.subr.bf16.mxu0 0
    %518 = vmatpush1.bf16.msra.mxu0 %v202
    %519 = vmatprep.subr.bf16.mxu0 0
    %520 = vmatpush1.bf16.msra.mxu0 0
    %521 = vmatprep.subr.bf16.mxu0 0
    %522 = vmatpush1.bf16.msra.mxu0 0
    %523 = vmatprep.subr.bf16.mxu0 0
    %524 = vmatpush1.bf16.msra.mxu0 0
    %525 = vmatprep.subr.bf16.mxu0 0
    %526 = vmatpush1.bf16.msra.mxu0 0
    %527 = vmatprep.subr.bf16.mxu0 0
    %528 = vmatpush1.bf16.msra.mxu0 0
    %529 = vmatprep.subr.bf16.mxu0 0
    %530 = vmatpush1.bf16.msra.mxu0 0
    %531 = vmatprep.subr.bf16.mxu0 0
    %532 = vmatpush1.bf16.msra.mxu0 0
    %533 = vmatprep.subr.bf16.mxu0 0
    %534 = vmatpush1.bf16.msra.mxu0 0
    %535 = vmatprep.subr.bf16.mxu0 0
    %536 = vmatpush1.bf16.msra.mxu0 0
    %537 = vmatprep.subr.bf16.mxu0 0
    %538 = vmatpush1.bf16.msra.mxu0 0
    %539 = vmatprep.subr.bf16.mxu0 0
    %540 = vmatpush1.bf16.msra.mxu0 0
    %541 = vmatprep.subr.bf16.mxu0 0
    %542 = vmatpush1.bf16.msra.mxu0 0
    %543 = vmatprep.subr.bf16.mxu0 0
    %544 = vmatpush1.bf16.msra.mxu0 0
    %545 = vmatprep.subr.bf16.mxu0 0
    %546 = vmatpush1.bf16.msra.mxu0 0
    %547 = vmatprep.mubr.bf16.mxu0 0
    %548 = vmatmul.mubr.bf16.gmra.mrb[0].mxu0 %v513
    %v549 = vpop.f32.mrb[0].mxu0
    %v550 = vadd.f32 0.0, %v549
    %v551 = vpop.f32.mrb[0].mxu0
    %v552 = vpop.f32.mrb[0].mxu0
    %v553 = vpop.f32.mrb[0].mxu0
    %554 = vdwg.mxu0
    %v556 = vrot.slane %v550, 7
    %v557 = vrot.slane %v550, 1
    %v558 = vrot.slane %v550, 2
    %v559 = vrot.slane %v550, 3
    %v560 = vrot.slane %v550, 4
    %v561 = vrot.slane %v550, 5
    %v562 = vrot.slane %v550, 6
    %v571 = vadd.f32 %v159, %v556
    %v572 = vadd.f32 %v162, %v550
    %v573 = vadd.f32 %v167, %v557
    %v574 = vadd.f32 %v170, %v558
    %v575 = vadd.f32 %v175, %v559
    %v576 = vadd.f32 %v178, %v560
    %v577 = vadd.f32 %v183, %v561
    %v578 = vadd.f32 %v186, %v562
    %v579 = vxor.u32 %v571, 2147483648
    %v580 = vxor.u32 %v572, 2147483648
    %v581 = vxor.u32 %v573, 2147483648
    %v582 = vxor.u32 %v574, 2147483648
    %v583 = vxor.u32 %v575, 2147483648
    %v584 = vxor.u32 %v576, 2147483648
    %v585 = vxor.u32 %v577, 2147483648
    %v586 = vxor.u32 %v578, 2147483648
    %v587 = vmul.f32 %v579, 1.442695
    %v588 = vpow.pop %v587
    %v589 = vmul.f32 %v580, 1.442695
    %v590 = vpow.pop %v589
    %v591 = vmul.f32 %v581, 1.442695
    %v592 = vpow.pop %v591
    %v593 = vmul.f32 %v582, 1.442695
    %v594 = vpow.pop %v593
    %v595 = vmul.f32 %v583, 1.442695
    %v596 = vpow.pop %v595
    %v597 = vmul.f32 %v584, 1.442695
    %v598 = vpow.pop %v597
    %v599 = vmul.f32 %v585, 1.442695
    %v600 = vpow.pop %v599
    %v601 = vmul.f32 %v586, 1.442695
    %v602 = vpow.pop %v601
    %v603 = vadd.f32 %v588, 1.0
    %v604 = vadd.f32 %v590, 1.0
    %v605 = vadd.f32 %v592, 1.0
    %v606 = vadd.f32 %v594, 1.0
    %v607 = vadd.f32 %v596, 1.0
    %v608 = vadd.f32 %v598, 1.0
    %v609 = vadd.f32 %v600, 1.0
    %v610 = vadd.f32 %v602, 1.0
    %v611 = vrcp.pop %v603
    %v612 = vmul.f32 1.0, %v611
    %v613 = vrcp.pop %v604
    %v614 = vmul.f32 1.0, %v613
    %v615 = vrcp.pop %v605
    %v616 = vmul.f32 1.0, %v615
    %v617 = vrcp.pop %v606
    %v618 = vmul.f32 1.0, %v617
    %v619 = vrcp.pop %v607
    %v620 = vmul.f32 1.0, %v619
    %v621 = vrcp.pop %v608
    %v622 = vmul.f32 1.0, %v621
    %v623 = vrcp.pop %v609
    %v624 = vmul.f32 1.0, %v623
    %v625 = vrcp.pop %v610
    %v626 = vmul.f32 1.0, %v625
    %v627 = vtanh.pop %v571
    %v628 = vtanh.pop %v572
    %v629 = vtanh.pop %v573
    %v630 = vtanh.pop %v574
    %v631 = vtanh.pop %v575
    %v632 = vtanh.pop %v576
    %v633 = vtanh.pop %v577
    %v634 = vtanh.pop %v578
    %v643 = vrot.slane %v408, 7
    %v644 = vrot.slane %v409, 7
    %v645 = vrot.slane %v410, 7
    %v646 = vrot.slane %v411, 7
    %v647 = vrot.slane %v412, 7
    %v648 = vrot.slane %v413, 7
    %v649 = vrot.slane %v414, 7
    %v650 = vrot.slane %v415, 7
    %v659 = vmul.f32 %v612, %v643
    %v660 = vmul.f32 %v614, %v644
    %v661 = vmul.f32 %v616, %v645
    %v662 = vmul.f32 %v618, %v646
    %v663 = vmul.f32 %v620, %v647
    %v664 = vmul.f32 %v622, %v648
    %v665 = vmul.f32 %v624, %v649
    %v666 = vmul.f32 %v626, %v650
    %675 = vrot.lane.b32.xlu0 %v627, 64
    %v676 = vpop.permute.xlu0 %675
    %677 = vrot.lane.b32.xlu0 %v628, 64
    %v678 = vpop.permute.xlu0 %677
    %679 = vrot.lane.b32.xlu0 %v629, 64
    %v680 = vpop.permute.xlu0 %679
    %681 = vrot.lane.b32.xlu0 %v630, 64
    %v682 = vpop.permute.xlu0 %681
    %683 = vrot.lane.b32.xlu0 %v631, 64
    %v684 = vpop.permute.xlu0 %683
    %685 = vrot.lane.b32.xlu0 %v632, 64
    %v686 = vpop.permute.xlu0 %685
    %687 = vrot.lane.b32.xlu0 %v633, 64
    %v688 = vpop.permute.xlu0 %687
    %689 = vrot.lane.b32.xlu0 %v634, 64
    %v690 = vpop.permute.xlu0 %689
    %v699 = vmul.f32 %v612, %v676
    %v700 = vmul.f32 %v614, %v678
    %v701 = vmul.f32 %v616, %v680
    %v702 = vmul.f32 %v618, %v682
    %v703 = vmul.f32 %v620, %v684
    %v704 = vmul.f32 %v622, %v686
    %v705 = vmul.f32 %v624, %v688
    %v706 = vmul.f32 %v626, %v690
    %715 = vrot.lane.b32.xlu0 %v699, 32
    %v716 = vpop.permute.xlu0 %715
    %717 = vrot.lane.b32.xlu0 %v700, 32
    %v718 = vpop.permute.xlu0 %717
    %719 = vrot.lane.b32.xlu0 %v701, 32
    %v720 = vpop.permute.xlu0 %719
    %721 = vrot.lane.b32.xlu0 %v702, 32
    %v722 = vpop.permute.xlu0 %721
    %723 = vrot.lane.b32.xlu0 %v703, 32
    %v724 = vpop.permute.xlu0 %723
    %725 = vrot.lane.b32.xlu0 %v704, 32
    %v726 = vpop.permute.xlu0 %725
    %727 = vrot.lane.b32.xlu0 %v705, 32
    %v728 = vpop.permute.xlu0 %727
    %729 = vrot.lane.b32.xlu0 %v706, 32
    %v730 = vpop.permute.xlu0 %729
    %v739 = vadd.f32 %v659, %v716
    %v740 = vadd.f32 %v660, %v718
    %v741 = vadd.f32 %v661, %v720
    %v742 = vadd.f32 %v662, %v722
    %v743 = vadd.f32 %v663, %v724
    %v744 = vadd.f32 %v664, %v726
    %v745 = vadd.f32 %v665, %v728
    %v746 = vadd.f32 %v666, %v730
    %v747 = vtanh.pop %v739
    %v748 = vtanh.pop %v740
    %v749 = vtanh.pop %v741
    %v750 = vtanh.pop %v742
    %v751 = vtanh.pop %v743
    %v752 = vtanh.pop %v744
    %v753 = vtanh.pop %v745
    %v754 = vtanh.pop %v746
    %763 = vrot.lane.b32.xlu0 %v747, 64
    %v764 = vpop.permute.xlu0 %763
    %765 = vrot.lane.b32.xlu0 %v748, 64
    %v766 = vpop.permute.xlu0 %765
    %767 = vrot.lane.b32.xlu0 %v749, 64
    %v768 = vpop.permute.xlu0 %767
    %769 = vrot.lane.b32.xlu0 %v750, 64
    %v770 = vpop.permute.xlu0 %769
    %771 = vrot.lane.b32.xlu0 %v751, 64
    %v772 = vpop.permute.xlu0 %771
    %773 = vrot.lane.b32.xlu0 %v752, 64
    %v774 = vpop.permute.xlu0 %773
    %775 = vrot.lane.b32.xlu0 %v753, 64
    %v776 = vpop.permute.xlu0 %775
    %777 = vrot.lane.b32.xlu0 %v754, 64
    %v778 = vpop.permute.xlu0 %777
    %v787 = vmul.f32 %v612, %v764
    %v788 = vmul.f32 %v614, %v766
    %v789 = vmul.f32 %v616, %v768
    %v790 = vmul.f32 %v618, %v770
    %v791 = vmul.f32 %v620, %v772
    %v792 = vmul.f32 %v622, %v774
    %v793 = vmul.f32 %v624, %v776
    %v794 = vmul.f32 %v626, %v778
    %v795 = vpack.c.bf16 %v787, %v787
    %v796 = vpack.c.bf16 %v788, %v788
    %v797 = vpack.c.bf16 %v789, %v789
    %v798 = vpack.c.bf16 %v790, %v790
    %v799 = vpack.c.bf16 %v791, %v791
    %v800 = vpack.c.bf16 %v792, %v792
    %v801 = vpack.c.bf16 %v793, %v793
    %v802 = vpack.c.bf16 %v794, %v794
    %v811 = vunpack.c.l.b16 %v795
    %v812 = vunpack.c.l.b16 %v796
    %v813 = vunpack.c.l.b16 %v797
    %v814 = vunpack.c.l.b16 %v798
    %v815 = vunpack.c.l.b16 %v799
    %v816 = vunpack.c.l.b16 %v800
    %v817 = vunpack.c.l.b16 %v801
    %v818 = vunpack.c.l.b16 %v802
    %v819 = vrot.slane %v811, 1
    %v820 = vsel %vm489, %v812, %v819
    %v821 = vrot.slane %v813, 7
    %v822 = vsel %vm492, %v821, %v820
    %v823 = vrot.slane %v814, 6
    %v824 = vsel %vm495, %v823, %v822
    %v825 = vrot.slane %v815, 5
    %v826 = vsel %vm498, %v825, %v824
    %v827 = vrot.slane %v816, 4
    %v828 = vsel %vm501, %v827, %v826
    %v829 = vrot.slane %v817, 3
    %v830 = vsel %vm504, %v829, %v828
    %v831 = vrot.slane %v818, 2
    %v832 = vsel %vm507, %v831, %v830
    %v833 = vpack.c.b16 %v832, %v832
    %834 = vrot.lane.b32.xlu0 %v833, 32
    %v835 = vpop.permute.xlu0 %834
    %v837 = vsel %vm111, %v835, 0
    %839 = vmatprep.subr.bf16.mxu0 0
    %840 = vmatpush1.bf16.msra.mxu0 %v201
    %841 = vmatprep.subr.bf16.mxu0 0
    %842 = vmatpush1.bf16.msra.mxu0 %v202
    %843 = vmatprep.subr.bf16.mxu0 0
    %844 = vmatpush1.bf16.msra.mxu0 0
    %845 = vmatprep.subr.bf16.mxu0 0
    %846 = vmatpush1.bf16.msra.mxu0 0
    %847 = vmatprep.subr.bf16.mxu0 0
    %848 = vmatpush1.bf16.msra.mxu0 0
    %849 = vmatprep.subr.bf16.mxu0 0
    %850 = vmatpush1.bf16.msra.mxu0 0
    %851 = vmatprep.subr.bf16.mxu0 0
    %852 = vmatpush1.bf16.msra.mxu0 0
    %853 = vmatprep.subr.bf16.mxu0 0
    %854 = vmatpush1.bf16.msra.mxu0 0
    %855 = vmatprep.subr.bf16.mxu0 0
    %856 = vmatpush1.bf16.msra.mxu0 0
    %857 = vmatprep.subr.bf16.mxu0 0
    %858 = vmatpush1.bf16.msra.mxu0 0
    %859 = vmatprep.subr.bf16.mxu0 0
    %860 = vmatpush1.bf16.msra.mxu0 0
    %861 = vmatprep.subr.bf16.mxu0 0
    %862 = vmatpush1.bf16.msra.mxu0 0
    %863 = vmatprep.subr.bf16.mxu0 0
    %864 = vmatpush1.bf16.msra.mxu0 0
    %865 = vmatprep.subr.bf16.mxu0 0
    %866 = vmatpush1.bf16.msra.mxu0 0
    %867 = vmatprep.subr.bf16.mxu0 0
    %868 = vmatpush1.bf16.msra.mxu0 0
    %869 = vmatprep.subr.bf16.mxu0 0
    %870 = vmatpush1.bf16.msra.mxu0 0
    %871 = vmatprep.mubr.bf16.mxu0 0
    %872 = vmatmul.mubr.bf16.gmra.mrb[0].mxu0 %v837
    %v873 = vpop.f32.mrb[0].mxu0
    %v874 = vadd.f32 0.0, %v873
    %v875 = vpop.f32.mrb[0].mxu0
    %v876 = vpop.f32.mrb[0].mxu0
    %v877 = vpop.f32.mrb[0].mxu0
    %878 = vdwg.mxu0
    %v880 = vrot.slane %v874, 6
    %v881 = vrot.slane %v874, 7
    %v882 = vrot.slane %v874, 1
    %v883 = vrot.slane %v874, 2
    %v884 = vrot.slane %v874, 3
    %v885 = vrot.slane %v874, 4
    %v886 = vrot.slane %v874, 5
    %v895 = vadd.f32 %v159, %v880
    %v896 = vadd.f32 %v162, %v881
    %v897 = vadd.f32 %v167, %v874
    %v898 = vadd.f32 %v170, %v882
    %v899 = vadd.f32 %v175, %v883
    %v900 = vadd.f32 %v178, %v884
    %v901 = vadd.f32 %v183, %v885
    %v902 = vadd.f32 %v186, %v886
    %v903 = vxor.u32 %v895, 2147483648
    %v904 = vxor.u32 %v896, 2147483648
    %v905 = vxor.u32 %v897, 2147483648
    %v906 = vxor.u32 %v898, 2147483648
    %v907 = vxor.u32 %v899, 2147483648
    %v908 = vxor.u32 %v900, 2147483648
    %v909 = vxor.u32 %v901, 2147483648
    %v910 = vxor.u32 %v902, 2147483648
    %v911 = vmul.f32 %v903, 1.442695
    %v912 = vpow.pop %v911
    %v913 = vmul.f32 %v904, 1.442695
    %v914 = vpow.pop %v913
    %v915 = vmul.f32 %v905, 1.442695
    %v916 = vpow.pop %v915
    %v917 = vmul.f32 %v906, 1.442695
    %v918 = vpow.pop %v917
    %v919 = vmul.f32 %v907, 1.442695
    %v920 = vpow.pop %v919
    %v921 = vmul.f32 %v908, 1.442695
    %v922 = vpow.pop %v921
    %v923 = vmul.f32 %v909, 1.442695
    %v924 = vpow.pop %v923
    %v925 = vmul.f32 %v910, 1.442695
    %v926 = vpow.pop %v925
    %v927 = vadd.f32 %v912, 1.0
    %v928 = vadd.f32 %v914, 1.0
    %v929 = vadd.f32 %v916, 1.0
    %v930 = vadd.f32 %v918, 1.0
    %v931 = vadd.f32 %v920, 1.0
    %v932 = vadd.f32 %v922, 1.0
    %v933 = vadd.f32 %v924, 1.0
    %v934 = vadd.f32 %v926, 1.0
    %v935 = vrcp.pop %v927
    %v936 = vmul.f32 1.0, %v935
    %v937 = vrcp.pop %v928
    %v938 = vmul.f32 1.0, %v937
    %v939 = vrcp.pop %v929
    %v940 = vmul.f32 1.0, %v939
    %v941 = vrcp.pop %v930
    %v942 = vmul.f32 1.0, %v941
    %v943 = vrcp.pop %v931
    %v944 = vmul.f32 1.0, %v943
    %v945 = vrcp.pop %v932
    %v946 = vmul.f32 1.0, %v945
    %v947 = vrcp.pop %v933
    %v948 = vmul.f32 1.0, %v947
    %v949 = vrcp.pop %v934
    %v950 = vmul.f32 1.0, %v949
    %v951 = vtanh.pop %v895
    %v952 = vtanh.pop %v896
    %v953 = vtanh.pop %v897
    %v954 = vtanh.pop %v898
    %v955 = vtanh.pop %v899
    %v956 = vtanh.pop %v900
    %v957 = vtanh.pop %v901
    %v958 = vtanh.pop %v902
    %v967 = vrot.slane %v739, 7
    %v968 = vrot.slane %v740, 7
    %v969 = vrot.slane %v741, 7
    %v970 = vrot.slane %v742, 7
    %v971 = vrot.slane %v743, 7
    %v972 = vrot.slane %v744, 7
    %v973 = vrot.slane %v745, 7
    %v974 = vrot.slane %v746, 7
    %v983 = vmul.f32 %v936, %v967
    %v984 = vmul.f32 %v938, %v968
    %v985 = vmul.f32 %v940, %v969
    %v986 = vmul.f32 %v942, %v970
    %v987 = vmul.f32 %v944, %v971
    %v988 = vmul.f32 %v946, %v972
    %v989 = vmul.f32 %v948, %v973
    %v990 = vmul.f32 %v950, %v974
    %999 = vrot.lane.b32.xlu0 %v951, 64
    %v1000 = vpop.permute.xlu0 %999
    %1001 = vrot.lane.b32.xlu0 %v952, 64
    %v1002 = vpop.permute.xlu0 %1001
    %1003 = vrot.lane.b32.xlu0 %v953, 64
    %v1004 = vpop.permute.xlu0 %1003
    %1005 = vrot.lane.b32.xlu0 %v954, 64
    %v1006 = vpop.permute.xlu0 %1005
    %1007 = vrot.lane.b32.xlu0 %v955, 64
    %v1008 = vpop.permute.xlu0 %1007
    %1009 = vrot.lane.b32.xlu0 %v956, 64
    %v1010 = vpop.permute.xlu0 %1009
    %1011 = vrot.lane.b32.xlu0 %v957, 64
    %v1012 = vpop.permute.xlu0 %1011
    %1013 = vrot.lane.b32.xlu0 %v958, 64
    %v1014 = vpop.permute.xlu0 %1013
    %v1023 = vmul.f32 %v936, %v1000
    %v1024 = vmul.f32 %v938, %v1002
    %v1025 = vmul.f32 %v940, %v1004
    %v1026 = vmul.f32 %v942, %v1006
    %v1027 = vmul.f32 %v944, %v1008
    %v1028 = vmul.f32 %v946, %v1010
    %v1029 = vmul.f32 %v948, %v1012
    %v1030 = vmul.f32 %v950, %v1014
    %1039 = vrot.lane.b32.xlu0 %v1023, 32
    %v1040 = vpop.permute.xlu0 %1039
    %1041 = vrot.lane.b32.xlu0 %v1024, 32
    %v1042 = vpop.permute.xlu0 %1041
    %1043 = vrot.lane.b32.xlu0 %v1025, 32
    %v1044 = vpop.permute.xlu0 %1043
    %1045 = vrot.lane.b32.xlu0 %v1026, 32
    %v1046 = vpop.permute.xlu0 %1045
    %1047 = vrot.lane.b32.xlu0 %v1027, 32
    %v1048 = vpop.permute.xlu0 %1047
    %1049 = vrot.lane.b32.xlu0 %v1028, 32
    %v1050 = vpop.permute.xlu0 %1049
    %1051 = vrot.lane.b32.xlu0 %v1029, 32
    %v1052 = vpop.permute.xlu0 %1051
    %1053 = vrot.lane.b32.xlu0 %v1030, 32
    %v1054 = vpop.permute.xlu0 %1053
    %v1063 = vadd.f32 %v983, %v1040
    %v1064 = vadd.f32 %v984, %v1042
    %v1065 = vadd.f32 %v985, %v1044
    %v1066 = vadd.f32 %v986, %v1046
    %v1067 = vadd.f32 %v987, %v1048
    %v1068 = vadd.f32 %v988, %v1050
    %v1069 = vadd.f32 %v989, %v1052
    %v1070 = vadd.f32 %v990, %v1054
    %v1071 = vtanh.pop %v1063
    %v1072 = vtanh.pop %v1064
    %v1073 = vtanh.pop %v1065
    %v1074 = vtanh.pop %v1066
    %v1075 = vtanh.pop %v1067
    %v1076 = vtanh.pop %v1068
    %v1077 = vtanh.pop %v1069
    %v1078 = vtanh.pop %v1070
    %1087 = vrot.lane.b32.xlu0 %v1071, 64
    %v1088 = vpop.permute.xlu0 %1087
    %1089 = vrot.lane.b32.xlu0 %v1072, 64
    %v1090 = vpop.permute.xlu0 %1089
    %1091 = vrot.lane.b32.xlu0 %v1073, 64
    %v1092 = vpop.permute.xlu0 %1091
    %1093 = vrot.lane.b32.xlu0 %v1074, 64
    %v1094 = vpop.permute.xlu0 %1093
    %1095 = vrot.lane.b32.xlu0 %v1075, 64
    %v1096 = vpop.permute.xlu0 %1095
    %1097 = vrot.lane.b32.xlu0 %v1076, 64
    %v1098 = vpop.permute.xlu0 %1097
    %1099 = vrot.lane.b32.xlu0 %v1077, 64
    %v1100 = vpop.permute.xlu0 %1099
    %1101 = vrot.lane.b32.xlu0 %v1078, 64
    %v1102 = vpop.permute.xlu0 %1101
    %v1111 = vmul.f32 %v936, %v1088
    %v1112 = vmul.f32 %v938, %v1090
    %v1113 = vmul.f32 %v940, %v1092
    %v1114 = vmul.f32 %v942, %v1094
    %v1115 = vmul.f32 %v944, %v1096
    %v1116 = vmul.f32 %v946, %v1098
    %v1117 = vmul.f32 %v948, %v1100
    %v1118 = vmul.f32 %v950, %v1102
    %v1119 = vpack.c.bf16 %v1111, %v1111
    %v1120 = vpack.c.bf16 %v1112, %v1112
    %v1121 = vpack.c.bf16 %v1113, %v1113
    %v1122 = vpack.c.bf16 %v1114, %v1114
    %v1123 = vpack.c.bf16 %v1115, %v1115
    %v1124 = vpack.c.bf16 %v1116, %v1116
    %v1125 = vpack.c.bf16 %v1117, %v1117
    %v1126 = vpack.c.bf16 %v1118, %v1118
    %v1135 = vunpack.c.l.b16 %v1119
    %v1136 = vunpack.c.l.b16 %v1120
    %v1137 = vunpack.c.l.b16 %v1121
    %v1138 = vunpack.c.l.b16 %v1122
    %v1139 = vunpack.c.l.b16 %v1123
    %v1140 = vunpack.c.l.b16 %v1124
    %v1141 = vunpack.c.l.b16 %v1125
    %v1142 = vunpack.c.l.b16 %v1126
    %v1143 = vrot.slane %v1135, 2
    %v1144 = vrot.slane %v1136, 1
    %v1145 = vsel %vm489, %v1144, %v1143
    %v1146 = vsel %vm492, %v1137, %v1145
    %v1147 = vrot.slane %v1138, 7
    %v1148 = vsel %vm495, %v1147, %v1146
    %v1149 = vrot.slane %v1139, 6
    %v1150 = vsel %vm498, %v1149, %v1148
    %v1151 = vrot.slane %v1140, 5
    %v1152 = vsel %vm501, %v1151, %v1150
    %v1153 = vrot.slane %v1141, 4
    %v1154 = vsel %vm504, %v1153, %v1152
    %v1155 = vrot.slane %v1142, 3
    %v1156 = vsel %vm507, %v1155, %v1154
    %v1157 = vpack.c.b16 %v1156, %v1156
    %1158 = vrot.lane.b32.xlu0 %v1157, 32
    %v1159 = vpop.permute.xlu0 %1158
    %v1161 = vsel %vm111, %v1159, 0
    %1163 = vmatprep.subr.bf16.mxu0 0
    %1164 = vmatpush1.bf16.msra.mxu0 %v201
    %1165 = vmatprep.subr.bf16.mxu0 0
    %1166 = vmatpush1.bf16.msra.mxu0 %v202
    %1167 = vmatprep.subr.bf16.mxu0 0
    %1168 = vmatpush1.bf16.msra.mxu0 0
    %1169 = vmatprep.subr.bf16.mxu0 0
    %1170 = vmatpush1.bf16.msra.mxu0 0
    %1171 = vmatprep.subr.bf16.mxu0 0
    %1172 = vmatpush1.bf16.msra.mxu0 0
    %1173 = vmatprep.subr.bf16.mxu0 0
    %1174 = vmatpush1.bf16.msra.mxu0 0
    %1175 = vmatprep.subr.bf16.mxu0 0
    %1176 = vmatpush1.bf16.msra.mxu0 0
    %1177 = vmatprep.subr.bf16.mxu0 0
    %1178 = vmatpush1.bf16.msra.mxu0 0
    %1179 = vmatprep.subr.bf16.mxu0 0
    %1180 = vmatpush1.bf16.msra.mxu0 0
    %1181 = vmatprep.subr.bf16.mxu0 0
    %1182 = vmatpush1.bf16.msra.mxu0 0
    %1183 = vmatprep.subr.bf16.mxu0 0
    %1184 = vmatpush1.bf16.msra.mxu0 0
    %1185 = vmatprep.subr.bf16.mxu0 0
    %1186 = vmatpush1.bf16.msra.mxu0 0
    %1187 = vmatprep.subr.bf16.mxu0 0
    %1188 = vmatpush1.bf16.msra.mxu0 0
    %1189 = vmatprep.subr.bf16.mxu0 0
    %1190 = vmatpush1.bf16.msra.mxu0 0
    %1191 = vmatprep.subr.bf16.mxu0 0
    %1192 = vmatpush1.bf16.msra.mxu0 0
    %1193 = vmatprep.subr.bf16.mxu0 0
    %1194 = vmatpush1.bf16.msra.mxu0 0
    %1195 = vmatprep.mubr.bf16.mxu0 0
    %1196 = vmatmul.mubr.bf16.gmra.mrb[0].mxu0 %v1161
    %v1197 = vpop.f32.mrb[0].mxu0
    %v1198 = vadd.f32 0.0, %v1197
    %v1199 = vpop.f32.mrb[0].mxu0
    %v1200 = vpop.f32.mrb[0].mxu0
    %v1201 = vpop.f32.mrb[0].mxu0
    %1202 = vdwg.mxu0
    %v1204 = vrot.slane %v1198, 5
    %v1205 = vrot.slane %v1198, 6
    %v1206 = vrot.slane %v1198, 7
    %v1207 = vrot.slane %v1198, 1
    %v1208 = vrot.slane %v1198, 2
    %v1209 = vrot.slane %v1198, 3
    %v1210 = vrot.slane %v1198, 4
    %v1219 = vadd.f32 %v159, %v1204
    %v1220 = vadd.f32 %v162, %v1205
    %v1221 = vadd.f32 %v167, %v1206
    %v1222 = vadd.f32 %v170, %v1198
    %v1223 = vadd.f32 %v175, %v1207
    %v1224 = vadd.f32 %v178, %v1208
    %v1225 = vadd.f32 %v183, %v1209
    %v1226 = vadd.f32 %v186, %v1210
    %v1227 = vxor.u32 %v1219, 2147483648
    %v1228 = vxor.u32 %v1220, 2147483648
    %v1229 = vxor.u32 %v1221, 2147483648
    %v1230 = vxor.u32 %v1222, 2147483648
    %v1231 = vxor.u32 %v1223, 2147483648
    %v1232 = vxor.u32 %v1224, 2147483648
    %v1233 = vxor.u32 %v1225, 2147483648
    %v1234 = vxor.u32 %v1226, 2147483648
    %v1235 = vmul.f32 %v1227, 1.442695
    %v1236 = vpow.pop %v1235
    %v1237 = vmul.f32 %v1228, 1.442695
    %v1238 = vpow.pop %v1237
    %v1239 = vmul.f32 %v1229, 1.442695
    %v1240 = vpow.pop %v1239
    %v1241 = vmul.f32 %v1230, 1.442695
    %v1242 = vpow.pop %v1241
    %v1243 = vmul.f32 %v1231, 1.442695
    %v1244 = vpow.pop %v1243
    %v1245 = vmul.f32 %v1232, 1.442695
    %v1246 = vpow.pop %v1245
    %v1247 = vmul.f32 %v1233, 1.442695
    %v1248 = vpow.pop %v1247
    %v1249 = vmul.f32 %v1234, 1.442695
    %v1250 = vpow.pop %v1249
    %v1251 = vadd.f32 %v1236, 1.0
    %v1252 = vadd.f32 %v1238, 1.0
    %v1253 = vadd.f32 %v1240, 1.0
    %v1254 = vadd.f32 %v1242, 1.0
    %v1255 = vadd.f32 %v1244, 1.0
    %v1256 = vadd.f32 %v1246, 1.0
    %v1257 = vadd.f32 %v1248, 1.0
    %v1258 = vadd.f32 %v1250, 1.0
    %v1259 = vrcp.pop %v1251
    %v1260 = vmul.f32 1.0, %v1259
    %v1261 = vrcp.pop %v1252
    %v1262 = vmul.f32 1.0, %v1261
    %v1263 = vrcp.pop %v1253
    %v1264 = vmul.f32 1.0, %v1263
    %v1265 = vrcp.pop %v1254
    %v1266 = vmul.f32 1.0, %v1265
    %v1267 = vrcp.pop %v1255
    %v1268 = vmul.f32 1.0, %v1267
    %v1269 = vrcp.pop %v1256
    %v1270 = vmul.f32 1.0, %v1269
    %v1271 = vrcp.pop %v1257
    %v1272 = vmul.f32 1.0, %v1271
    %v1273 = vrcp.pop %v1258
    %v1274 = vmul.f32 1.0, %v1273
    %v1275 = vtanh.pop %v1219
    %v1276 = vtanh.pop %v1220
    %v1277 = vtanh.pop %v1221
    %v1278 = vtanh.pop %v1222
    %v1279 = vtanh.pop %v1223
    %v1280 = vtanh.pop %v1224
    %v1281 = vtanh.pop %v1225
    %v1282 = vtanh.pop %v1226
    %v1291 = vrot.slane %v1063, 7
    %v1292 = vrot.slane %v1064, 7
    %v1293 = vrot.slane %v1065, 7
    %v1294 = vrot.slane %v1066, 7
    %v1295 = vrot.slane %v1067, 7
    %v1296 = vrot.slane %v1068, 7
    %v1297 = vrot.slane %v1069, 7
    %v1298 = vrot.slane %v1070, 7
    %v1307 = vmul.f32 %v1260, %v1291
    %v1308 = vmul.f32 %v1262, %v1292
    %v1309 = vmul.f32 %v1264, %v1293
    %v1310 = vmul.f32 %v1266, %v1294
    %v1311 = vmul.f32 %v1268, %v1295
    %v1312 = vmul.f32 %v1270, %v1296
    %v1313 = vmul.f32 %v1272, %v1297
    %v1314 = vmul.f32 %v1274, %v1298
    %1323 = vrot.lane.b32.xlu0 %v1275, 64
    %v1324 = vpop.permute.xlu0 %1323
    %1325 = vrot.lane.b32.xlu0 %v1276, 64
    %v1326 = vpop.permute.xlu0 %1325
    %1327 = vrot.lane.b32.xlu0 %v1277, 64
    %v1328 = vpop.permute.xlu0 %1327
    %1329 = vrot.lane.b32.xlu0 %v1278, 64
    %v1330 = vpop.permute.xlu0 %1329
    %1331 = vrot.lane.b32.xlu0 %v1279, 64
    %v1332 = vpop.permute.xlu0 %1331
    %1333 = vrot.lane.b32.xlu0 %v1280, 64
    %v1334 = vpop.permute.xlu0 %1333
    %1335 = vrot.lane.b32.xlu0 %v1281, 64
    %v1336 = vpop.permute.xlu0 %1335
    %1337 = vrot.lane.b32.xlu0 %v1282, 64
    %v1338 = vpop.permute.xlu0 %1337
    %v1347 = vmul.f32 %v1260, %v1324
    %v1348 = vmul.f32 %v1262, %v1326
    %v1349 = vmul.f32 %v1264, %v1328
    %v1350 = vmul.f32 %v1266, %v1330
    %v1351 = vmul.f32 %v1268, %v1332
    %v1352 = vmul.f32 %v1270, %v1334
    %v1353 = vmul.f32 %v1272, %v1336
    %v1354 = vmul.f32 %v1274, %v1338
    %1363 = vrot.lane.b32.xlu0 %v1347, 32
    %v1364 = vpop.permute.xlu0 %1363
    %1365 = vrot.lane.b32.xlu0 %v1348, 32
    %v1366 = vpop.permute.xlu0 %1365
    %1367 = vrot.lane.b32.xlu0 %v1349, 32
    %v1368 = vpop.permute.xlu0 %1367
    %1369 = vrot.lane.b32.xlu0 %v1350, 32
    %v1370 = vpop.permute.xlu0 %1369
    %1371 = vrot.lane.b32.xlu0 %v1351, 32
    %v1372 = vpop.permute.xlu0 %1371
    %1373 = vrot.lane.b32.xlu0 %v1352, 32
    %v1374 = vpop.permute.xlu0 %1373
    %1375 = vrot.lane.b32.xlu0 %v1353, 32
    %v1376 = vpop.permute.xlu0 %1375
    %1377 = vrot.lane.b32.xlu0 %v1354, 32
    %v1378 = vpop.permute.xlu0 %1377
    %v1387 = vadd.f32 %v1307, %v1364
    %v1388 = vadd.f32 %v1308, %v1366
    %v1389 = vadd.f32 %v1309, %v1368
    %v1390 = vadd.f32 %v1310, %v1370
    %v1391 = vadd.f32 %v1311, %v1372
    %v1392 = vadd.f32 %v1312, %v1374
    %v1393 = vadd.f32 %v1313, %v1376
    %v1394 = vadd.f32 %v1314, %v1378
    %v1395 = vtanh.pop %v1387
    %v1396 = vtanh.pop %v1388
    %v1397 = vtanh.pop %v1389
    %v1398 = vtanh.pop %v1390
    %v1399 = vtanh.pop %v1391
    %v1400 = vtanh.pop %v1392
    %v1401 = vtanh.pop %v1393
    %v1402 = vtanh.pop %v1394
    %1411 = vrot.lane.b32.xlu0 %v1395, 64
    %v1412 = vpop.permute.xlu0 %1411
    %1413 = vrot.lane.b32.xlu0 %v1396, 64
    %v1414 = vpop.permute.xlu0 %1413
    %1415 = vrot.lane.b32.xlu0 %v1397, 64
    %v1416 = vpop.permute.xlu0 %1415
    %1417 = vrot.lane.b32.xlu0 %v1398, 64
    %v1418 = vpop.permute.xlu0 %1417
    %1419 = vrot.lane.b32.xlu0 %v1399, 64
    %v1420 = vpop.permute.xlu0 %1419
    %1421 = vrot.lane.b32.xlu0 %v1400, 64
    %v1422 = vpop.permute.xlu0 %1421
    %1423 = vrot.lane.b32.xlu0 %v1401, 64
    %v1424 = vpop.permute.xlu0 %1423
    %1425 = vrot.lane.b32.xlu0 %v1402, 64
    %v1426 = vpop.permute.xlu0 %1425
    %v1435 = vmul.f32 %v1260, %v1412
    %v1436 = vmul.f32 %v1262, %v1414
    %v1437 = vmul.f32 %v1264, %v1416
    %v1438 = vmul.f32 %v1266, %v1418
    %v1439 = vmul.f32 %v1268, %v1420
    %v1440 = vmul.f32 %v1270, %v1422
    %v1441 = vmul.f32 %v1272, %v1424
    %v1442 = vmul.f32 %v1274, %v1426
    %v1443 = vpack.c.bf16 %v1435, %v1435
    %v1444 = vpack.c.bf16 %v1436, %v1436
    %v1445 = vpack.c.bf16 %v1437, %v1437
    %v1446 = vpack.c.bf16 %v1438, %v1438
    %v1447 = vpack.c.bf16 %v1439, %v1439
    %v1448 = vpack.c.bf16 %v1440, %v1440
    %v1449 = vpack.c.bf16 %v1441, %v1441
    %v1450 = vpack.c.bf16 %v1442, %v1442
    %v1459 = vunpack.c.l.b16 %v1443
    %v1460 = vunpack.c.l.b16 %v1444
    %v1461 = vunpack.c.l.b16 %v1445
    %v1462 = vunpack.c.l.b16 %v1446
    %v1463 = vunpack.c.l.b16 %v1447
    %v1464 = vunpack.c.l.b16 %v1448
    %v1465 = vunpack.c.l.b16 %v1449
    %v1466 = vunpack.c.l.b16 %v1450
    %v1467 = vrot.slane %v1459, 3
    %v1468 = vrot.slane %v1460, 2
    %v1469 = vsel %vm489, %v1468, %v1467
    %v1470 = vrot.slane %v1461, 1
    %v1471 = vsel %vm492, %v1470, %v1469
    %v1472 = vsel %vm495, %v1462, %v1471
    %v1473 = vrot.slane %v1463, 7
    %v1474 = vsel %vm498, %v1473, %v1472
    %v1475 = vrot.slane %v1464, 6
    %v1476 = vsel %vm501, %v1475, %v1474
    %v1477 = vrot.slane %v1465, 5
    %v1478 = vsel %vm504, %v1477, %v1476
    %v1479 = vrot.slane %v1466, 4
    %v1480 = vsel %vm507, %v1479, %v1478
    %v1481 = vpack.c.b16 %v1480, %v1480
    %1482 = vrot.lane.b32.xlu0 %v1481, 32
    %v1483 = vpop.permute.xlu0 %1482
    %v1485 = vsel %vm111, %v1483, 0
    %1487 = vmatprep.subr.bf16.mxu0 0
    %1488 = vmatpush1.bf16.msra.mxu0 %v201
    %1489 = vmatprep.subr.bf16.mxu0 0
    %1490 = vmatpush1.bf16.msra.mxu0 %v202
    %1491 = vmatprep.subr.bf16.mxu0 0
    %1492 = vmatpush1.bf16.msra.mxu0 0
    %1493 = vmatprep.subr.bf16.mxu0 0
    %1494 = vmatpush1.bf16.msra.mxu0 0
    %1495 = vmatprep.subr.bf16.mxu0 0
    %1496 = vmatpush1.bf16.msra.mxu0 0
    %1497 = vmatprep.subr.bf16.mxu0 0
    %1498 = vmatpush1.bf16.msra.mxu0 0
    %1499 = vmatprep.subr.bf16.mxu0 0
    %1500 = vmatpush1.bf16.msra.mxu0 0
    %1501 = vmatprep.subr.bf16.mxu0 0
    %1502 = vmatpush1.bf16.msra.mxu0 0
    %1503 = vmatprep.subr.bf16.mxu0 0
    %1504 = vmatpush1.bf16.msra.mxu0 0
    %1505 = vmatprep.subr.bf16.mxu0 0
    %1506 = vmatpush1.bf16.msra.mxu0 0
    %1507 = vmatprep.subr.bf16.mxu0 0
    %1508 = vmatpush1.bf16.msra.mxu0 0
    %1509 = vmatprep.subr.bf16.mxu0 0
    %1510 = vmatpush1.bf16.msra.mxu0 0
    %1511 = vmatprep.subr.bf16.mxu0 0
    %1512 = vmatpush1.bf16.msra.mxu0 0
    %1513 = vmatprep.subr.bf16.mxu0 0
    %1514 = vmatpush1.bf16.msra.mxu0 0
    %1515 = vmatprep.subr.bf16.mxu0 0
    %1516 = vmatpush1.bf16.msra.mxu0 0
    %1517 = vmatprep.subr.bf16.mxu0 0
    %1518 = vmatpush1.bf16.msra.mxu0 0
    %1519 = vmatprep.mubr.bf16.mxu0 0
    %1520 = vmatmul.mubr.bf16.gmra.mrb[0].mxu0 %v1485
    %v1521 = vpop.f32.mrb[0].mxu0
    %v1522 = vadd.f32 0.0, %v1521
    %v1523 = vpop.f32.mrb[0].mxu0
    %v1524 = vpop.f32.mrb[0].mxu0
    %v1525 = vpop.f32.mrb[0].mxu0
    %1526 = vdwg.mxu0
    %v1528 = vrot.slane %v1522, 4
    %v1529 = vrot.slane %v1522, 5
    %v1530 = vrot.slane %v1522, 6
    %v1531 = vrot.slane %v1522, 7
    %v1532 = vrot.slane %v1522, 1
    %v1533 = vrot.slane %v1522, 2
    %v1534 = vrot.slane %v1522, 3
    %v1543 = vadd.f32 %v159, %v1528
    %v1544 = vadd.f32 %v162, %v1529
    %v1545 = vadd.f32 %v167, %v1530
    %v1546 = vadd.f32 %v170, %v1531
    %v1547 = vadd.f32 %v175, %v1522
    %v1548 = vadd.f32 %v178, %v1532
    %v1549 = vadd.f32 %v183, %v1533
    %v1550 = vadd.f32 %v186, %v1534
    %v1551 = vxor.u32 %v1543, 2147483648
    %v1552 = vxor.u32 %v1544, 2147483648
    %v1553 = vxor.u32 %v1545, 2147483648
    %v1554 = vxor.u32 %v1546, 2147483648
    %v1555 = vxor.u32 %v1547, 2147483648
    %v1556 = vxor.u32 %v1548, 2147483648
    %v1557 = vxor.u32 %v1549, 2147483648
    %v1558 = vxor.u32 %v1550, 2147483648
    %v1559 = vmul.f32 %v1551, 1.442695
    %v1560 = vpow.pop %v1559
    %v1561 = vmul.f32 %v1552, 1.442695
    %v1562 = vpow.pop %v1561
    %v1563 = vmul.f32 %v1553, 1.442695
    %v1564 = vpow.pop %v1563
    %v1565 = vmul.f32 %v1554, 1.442695
    %v1566 = vpow.pop %v1565
    %v1567 = vmul.f32 %v1555, 1.442695
    %v1568 = vpow.pop %v1567
    %v1569 = vmul.f32 %v1556, 1.442695
    %v1570 = vpow.pop %v1569
    %v1571 = vmul.f32 %v1557, 1.442695
    %v1572 = vpow.pop %v1571
    %v1573 = vmul.f32 %v1558, 1.442695
    %v1574 = vpow.pop %v1573
    %v1575 = vadd.f32 %v1560, 1.0
    %v1576 = vadd.f32 %v1562, 1.0
    %v1577 = vadd.f32 %v1564, 1.0
    %v1578 = vadd.f32 %v1566, 1.0
    %v1579 = vadd.f32 %v1568, 1.0
    %v1580 = vadd.f32 %v1570, 1.0
    %v1581 = vadd.f32 %v1572, 1.0
    %v1582 = vadd.f32 %v1574, 1.0
    %v1583 = vrcp.pop %v1575
    %v1584 = vmul.f32 1.0, %v1583
    %v1585 = vrcp.pop %v1576
    %v1586 = vmul.f32 1.0, %v1585
    %v1587 = vrcp.pop %v1577
    %v1588 = vmul.f32 1.0, %v1587
    %v1589 = vrcp.pop %v1578
    %v1590 = vmul.f32 1.0, %v1589
    %v1591 = vrcp.pop %v1579
    %v1592 = vmul.f32 1.0, %v1591
    %v1593 = vrcp.pop %v1580
    %v1594 = vmul.f32 1.0, %v1593
    %v1595 = vrcp.pop %v1581
    %v1596 = vmul.f32 1.0, %v1595
    %v1597 = vrcp.pop %v1582
    %v1598 = vmul.f32 1.0, %v1597
    %v1599 = vtanh.pop %v1543
    %v1600 = vtanh.pop %v1544
    %v1601 = vtanh.pop %v1545
    %v1602 = vtanh.pop %v1546
    %v1603 = vtanh.pop %v1547
    %v1604 = vtanh.pop %v1548
    %v1605 = vtanh.pop %v1549
    %v1606 = vtanh.pop %v1550
    %v1615 = vrot.slane %v1387, 7
    %v1616 = vrot.slane %v1388, 7
    %v1617 = vrot.slane %v1389, 7
    %v1618 = vrot.slane %v1390, 7
    %v1619 = vrot.slane %v1391, 7
    %v1620 = vrot.slane %v1392, 7
    %v1621 = vrot.slane %v1393, 7
    %v1622 = vrot.slane %v1394, 7
    %v1631 = vmul.f32 %v1584, %v1615
    %v1632 = vmul.f32 %v1586, %v1616
    %v1633 = vmul.f32 %v1588, %v1617
    %v1634 = vmul.f32 %v1590, %v1618
    %v1635 = vmul.f32 %v1592, %v1619
    %v1636 = vmul.f32 %v1594, %v1620
    %v1637 = vmul.f32 %v1596, %v1621
    %v1638 = vmul.f32 %v1598, %v1622
    %1647 = vrot.lane.b32.xlu0 %v1599, 64
    %v1648 = vpop.permute.xlu0 %1647
    %1649 = vrot.lane.b32.xlu0 %v1600, 64
    %v1650 = vpop.permute.xlu0 %1649
    %1651 = vrot.lane.b32.xlu0 %v1601, 64
    %v1652 = vpop.permute.xlu0 %1651
    %1653 = vrot.lane.b32.xlu0 %v1602, 64
    %v1654 = vpop.permute.xlu0 %1653
    %1655 = vrot.lane.b32.xlu0 %v1603, 64
    %v1656 = vpop.permute.xlu0 %1655
    %1657 = vrot.lane.b32.xlu0 %v1604, 64
    %v1658 = vpop.permute.xlu0 %1657
    %1659 = vrot.lane.b32.xlu0 %v1605, 64
    %v1660 = vpop.permute.xlu0 %1659
    %1661 = vrot.lane.b32.xlu0 %v1606, 64
    %v1662 = vpop.permute.xlu0 %1661
    %v1671 = vmul.f32 %v1584, %v1648
    %v1672 = vmul.f32 %v1586, %v1650
    %v1673 = vmul.f32 %v1588, %v1652
    %v1674 = vmul.f32 %v1590, %v1654
    %v1675 = vmul.f32 %v1592, %v1656
    %v1676 = vmul.f32 %v1594, %v1658
    %v1677 = vmul.f32 %v1596, %v1660
    %v1678 = vmul.f32 %v1598, %v1662
    %1687 = vrot.lane.b32.xlu0 %v1671, 32
    %v1688 = vpop.permute.xlu0 %1687
    %1689 = vrot.lane.b32.xlu0 %v1672, 32
    %v1690 = vpop.permute.xlu0 %1689
    %1691 = vrot.lane.b32.xlu0 %v1673, 32
    %v1692 = vpop.permute.xlu0 %1691
    %1693 = vrot.lane.b32.xlu0 %v1674, 32
    %v1694 = vpop.permute.xlu0 %1693
    %1695 = vrot.lane.b32.xlu0 %v1675, 32
    %v1696 = vpop.permute.xlu0 %1695
    %1697 = vrot.lane.b32.xlu0 %v1676, 32
    %v1698 = vpop.permute.xlu0 %1697
    %1699 = vrot.lane.b32.xlu0 %v1677, 32
    %v1700 = vpop.permute.xlu0 %1699
    %1701 = vrot.lane.b32.xlu0 %v1678, 32
    %v1702 = vpop.permute.xlu0 %1701
    %v1711 = vadd.f32 %v1631, %v1688
    %v1712 = vadd.f32 %v1632, %v1690
    %v1713 = vadd.f32 %v1633, %v1692
    %v1714 = vadd.f32 %v1634, %v1694
    %v1715 = vadd.f32 %v1635, %v1696
    %v1716 = vadd.f32 %v1636, %v1698
    %v1717 = vadd.f32 %v1637, %v1700
    %v1718 = vadd.f32 %v1638, %v1702
    %v1719 = vtanh.pop %v1711
    %v1720 = vtanh.pop %v1712
    %v1721 = vtanh.pop %v1713
    %v1722 = vtanh.pop %v1714
    %v1723 = vtanh.pop %v1715
    %v1724 = vtanh.pop %v1716
    %v1725 = vtanh.pop %v1717
    %v1726 = vtanh.pop %v1718
    %1735 = vrot.lane.b32.xlu0 %v1719, 64
    %v1736 = vpop.permute.xlu0 %1735
    %1737 = vrot.lane.b32.xlu0 %v1720, 64
    %v1738 = vpop.permute.xlu0 %1737
    %1739 = vrot.lane.b32.xlu0 %v1721, 64
    %v1740 = vpop.permute.xlu0 %1739
    %1741 = vrot.lane.b32.xlu0 %v1722, 64
    %v1742 = vpop.permute.xlu0 %1741
    %1743 = vrot.lane.b32.xlu0 %v1723, 64
    %v1744 = vpop.permute.xlu0 %1743
    %1745 = vrot.lane.b32.xlu0 %v1724, 64
    %v1746 = vpop.permute.xlu0 %1745
    %1747 = vrot.lane.b32.xlu0 %v1725, 64
    %v1748 = vpop.permute.xlu0 %1747
    %1749 = vrot.lane.b32.xlu0 %v1726, 64
    %v1750 = vpop.permute.xlu0 %1749
    %v1759 = vmul.f32 %v1584, %v1736
    %v1760 = vmul.f32 %v1586, %v1738
    %v1761 = vmul.f32 %v1588, %v1740
    %v1762 = vmul.f32 %v1590, %v1742
    %v1763 = vmul.f32 %v1592, %v1744
    %v1764 = vmul.f32 %v1594, %v1746
    %v1765 = vmul.f32 %v1596, %v1748
    %v1766 = vmul.f32 %v1598, %v1750
    %v1767 = vpack.c.bf16 %v1759, %v1759
    %v1768 = vpack.c.bf16 %v1760, %v1760
    %v1769 = vpack.c.bf16 %v1761, %v1761
    %v1770 = vpack.c.bf16 %v1762, %v1762
    %v1771 = vpack.c.bf16 %v1763, %v1763
    %v1772 = vpack.c.bf16 %v1764, %v1764
    %v1773 = vpack.c.bf16 %v1765, %v1765
    %v1774 = vpack.c.bf16 %v1766, %v1766
    %v1783 = vunpack.c.l.b16 %v1767
    %v1784 = vunpack.c.l.b16 %v1768
    %v1785 = vunpack.c.l.b16 %v1769
    %v1786 = vunpack.c.l.b16 %v1770
    %v1787 = vunpack.c.l.b16 %v1771
    %v1788 = vunpack.c.l.b16 %v1772
    %v1789 = vunpack.c.l.b16 %v1773
    %v1790 = vunpack.c.l.b16 %v1774
    %v1791 = vrot.slane %v1783, 4
    %v1792 = vrot.slane %v1784, 3
    %v1793 = vsel %vm489, %v1792, %v1791
    %v1794 = vrot.slane %v1785, 2
    %v1795 = vsel %vm492, %v1794, %v1793
    %v1796 = vrot.slane %v1786, 1
    %v1797 = vsel %vm495, %v1796, %v1795
    %v1798 = vsel %vm498, %v1787, %v1797
    %v1799 = vrot.slane %v1788, 7
    %v1800 = vsel %vm501, %v1799, %v1798
    %v1801 = vrot.slane %v1789, 6
    %v1802 = vsel %vm504, %v1801, %v1800
    %v1803 = vrot.slane %v1790, 5
    %v1804 = vsel %vm507, %v1803, %v1802
    %v1805 = vpack.c.b16 %v1804, %v1804
    %1806 = vrot.lane.b32.xlu0 %v1805, 32
    %v1807 = vpop.permute.xlu0 %1806
    %v1809 = vsel %vm111, %v1807, 0
    %1811 = vmatprep.subr.bf16.mxu0 0
    %1812 = vmatpush1.bf16.msra.mxu0 %v201
    %1813 = vmatprep.subr.bf16.mxu0 0
    %1814 = vmatpush1.bf16.msra.mxu0 %v202
    %1815 = vmatprep.subr.bf16.mxu0 0
    %1816 = vmatpush1.bf16.msra.mxu0 0
    %1817 = vmatprep.subr.bf16.mxu0 0
    %1818 = vmatpush1.bf16.msra.mxu0 0
    %1819 = vmatprep.subr.bf16.mxu0 0
    %1820 = vmatpush1.bf16.msra.mxu0 0
    %1821 = vmatprep.subr.bf16.mxu0 0
    %1822 = vmatpush1.bf16.msra.mxu0 0
    %1823 = vmatprep.subr.bf16.mxu0 0
    %1824 = vmatpush1.bf16.msra.mxu0 0
    %1825 = vmatprep.subr.bf16.mxu0 0
    %1826 = vmatpush1.bf16.msra.mxu0 0
    %1827 = vmatprep.subr.bf16.mxu0 0
    %1828 = vmatpush1.bf16.msra.mxu0 0
    %1829 = vmatprep.subr.bf16.mxu0 0
    %1830 = vmatpush1.bf16.msra.mxu0 0
    %1831 = vmatprep.subr.bf16.mxu0 0
    %1832 = vmatpush1.bf16.msra.mxu0 0
    %1833 = vmatprep.subr.bf16.mxu0 0
    %1834 = vmatpush1.bf16.msra.mxu0 0
    %1835 = vmatprep.subr.bf16.mxu0 0
    %1836 = vmatpush1.bf16.msra.mxu0 0
    %1837 = vmatprep.subr.bf16.mxu0 0
    %1838 = vmatpush1.bf16.msra.mxu0 0
    %1839 = vmatprep.subr.bf16.mxu0 0
    %1840 = vmatpush1.bf16.msra.mxu0 0
    %1841 = vmatprep.subr.bf16.mxu0 0
    %1842 = vmatpush1.bf16.msra.mxu0 0
    %1843 = vmatprep.mubr.bf16.mxu0 0
    %1844 = vmatmul.mubr.bf16.gmra.mrb[0].mxu0 %v1809
    %v1845 = vpop.f32.mrb[0].mxu0
    %v1846 = vadd.f32 0.0, %v1845
    %v1847 = vpop.f32.mrb[0].mxu0
    %v1848 = vpop.f32.mrb[0].mxu0
    %v1849 = vpop.f32.mrb[0].mxu0
    %1850 = vdwg.mxu0
    %v1852 = vrot.slane %v1846, 3
    %v1853 = vrot.slane %v1846, 4
    %v1854 = vrot.slane %v1846, 5
    %v1855 = vrot.slane %v1846, 6
    %v1856 = vrot.slane %v1846, 7
    %v1857 = vrot.slane %v1846, 1
    %v1858 = vrot.slane %v1846, 2
    %v1867 = vadd.f32 %v159, %v1852
    %v1868 = vadd.f32 %v162, %v1853
    %v1869 = vadd.f32 %v167, %v1854
    %v1870 = vadd.f32 %v170, %v1855
    %v1871 = vadd.f32 %v175, %v1856
    %v1872 = vadd.f32 %v178, %v1846
    %v1873 = vadd.f32 %v183, %v1857
    %v1874 = vadd.f32 %v186, %v1858
    %v1875 = vxor.u32 %v1867, 2147483648
    %v1876 = vxor.u32 %v1868, 2147483648
    %v1877 = vxor.u32 %v1869, 2147483648
    %v1878 = vxor.u32 %v1870, 2147483648
    %v1879 = vxor.u32 %v1871, 2147483648
    %v1880 = vxor.u32 %v1872, 2147483648
    %v1881 = vxor.u32 %v1873, 2147483648
    %v1882 = vxor.u32 %v1874, 2147483648
    %v1883 = vmul.f32 %v1875, 1.442695
    %v1884 = vpow.pop %v1883
    %v1885 = vmul.f32 %v1876, 1.442695
    %v1886 = vpow.pop %v1885
    %v1887 = vmul.f32 %v1877, 1.442695
    %v1888 = vpow.pop %v1887
    %v1889 = vmul.f32 %v1878, 1.442695
    %v1890 = vpow.pop %v1889
    %v1891 = vmul.f32 %v1879, 1.442695
    %v1892 = vpow.pop %v1891
    %v1893 = vmul.f32 %v1880, 1.442695
    %v1894 = vpow.pop %v1893
    %v1895 = vmul.f32 %v1881, 1.442695
    %v1896 = vpow.pop %v1895
    %v1897 = vmul.f32 %v1882, 1.442695
    %v1898 = vpow.pop %v1897
    %v1899 = vadd.f32 %v1884, 1.0
    %v1900 = vadd.f32 %v1886, 1.0
    %v1901 = vadd.f32 %v1888, 1.0
    %v1902 = vadd.f32 %v1890, 1.0
    %v1903 = vadd.f32 %v1892, 1.0
    %v1904 = vadd.f32 %v1894, 1.0
    %v1905 = vadd.f32 %v1896, 1.0
    %v1906 = vadd.f32 %v1898, 1.0
    %v1907 = vrcp.pop %v1899
    %v1908 = vmul.f32 1.0, %v1907
    %v1909 = vrcp.pop %v1900
    %v1910 = vmul.f32 1.0, %v1909
    %v1911 = vrcp.pop %v1901
    %v1912 = vmul.f32 1.0, %v1911
    %v1913 = vrcp.pop %v1902
    %v1914 = vmul.f32 1.0, %v1913
    %v1915 = vrcp.pop %v1903
    %v1916 = vmul.f32 1.0, %v1915
    %v1917 = vrcp.pop %v1904
    %v1918 = vmul.f32 1.0, %v1917
    %v1919 = vrcp.pop %v1905
    %v1920 = vmul.f32 1.0, %v1919
    %v1921 = vrcp.pop %v1906
    %v1922 = vmul.f32 1.0, %v1921
    %v1923 = vtanh.pop %v1867
    %v1924 = vtanh.pop %v1868
    %v1925 = vtanh.pop %v1869
    %v1926 = vtanh.pop %v1870
    %v1927 = vtanh.pop %v1871
    %v1928 = vtanh.pop %v1872
    %v1929 = vtanh.pop %v1873
    %v1930 = vtanh.pop %v1874
    %v1939 = vrot.slane %v1711, 7
    %v1940 = vrot.slane %v1712, 7
    %v1941 = vrot.slane %v1713, 7
    %v1942 = vrot.slane %v1714, 7
    %v1943 = vrot.slane %v1715, 7
    %v1944 = vrot.slane %v1716, 7
    %v1945 = vrot.slane %v1717, 7
    %v1946 = vrot.slane %v1718, 7
    %v1955 = vmul.f32 %v1908, %v1939
    %v1956 = vmul.f32 %v1910, %v1940
    %v1957 = vmul.f32 %v1912, %v1941
    %v1958 = vmul.f32 %v1914, %v1942
    %v1959 = vmul.f32 %v1916, %v1943
    %v1960 = vmul.f32 %v1918, %v1944
    %v1961 = vmul.f32 %v1920, %v1945
    %v1962 = vmul.f32 %v1922, %v1946
    %1971 = vrot.lane.b32.xlu0 %v1923, 64
    %v1972 = vpop.permute.xlu0 %1971
    %1973 = vrot.lane.b32.xlu0 %v1924, 64
    %v1974 = vpop.permute.xlu0 %1973
    %1975 = vrot.lane.b32.xlu0 %v1925, 64
    %v1976 = vpop.permute.xlu0 %1975
    %1977 = vrot.lane.b32.xlu0 %v1926, 64
    %v1978 = vpop.permute.xlu0 %1977
    %1979 = vrot.lane.b32.xlu0 %v1927, 64
    %v1980 = vpop.permute.xlu0 %1979
    %1981 = vrot.lane.b32.xlu0 %v1928, 64
    %v1982 = vpop.permute.xlu0 %1981
    %1983 = vrot.lane.b32.xlu0 %v1929, 64
    %v1984 = vpop.permute.xlu0 %1983
    %1985 = vrot.lane.b32.xlu0 %v1930, 64
    %v1986 = vpop.permute.xlu0 %1985
    %v1995 = vmul.f32 %v1908, %v1972
    %v1996 = vmul.f32 %v1910, %v1974
    %v1997 = vmul.f32 %v1912, %v1976
    %v1998 = vmul.f32 %v1914, %v1978
    %v1999 = vmul.f32 %v1916, %v1980
    %v2000 = vmul.f32 %v1918, %v1982
    %v2001 = vmul.f32 %v1920, %v1984
    %v2002 = vmul.f32 %v1922, %v1986
    %2011 = vrot.lane.b32.xlu0 %v1995, 32
    %v2012 = vpop.permute.xlu0 %2011
    %2013 = vrot.lane.b32.xlu0 %v1996, 32
    %v2014 = vpop.permute.xlu0 %2013
    %2015 = vrot.lane.b32.xlu0 %v1997, 32
    %v2016 = vpop.permute.xlu0 %2015
    %2017 = vrot.lane.b32.xlu0 %v1998, 32
    %v2018 = vpop.permute.xlu0 %2017
    %2019 = vrot.lane.b32.xlu0 %v1999, 32
    %v2020 = vpop.permute.xlu0 %2019
    %2021 = vrot.lane.b32.xlu0 %v2000, 32
    %v2022 = vpop.permute.xlu0 %2021
    %2023 = vrot.lane.b32.xlu0 %v2001, 32
    %v2024 = vpop.permute.xlu0 %2023
    %2025 = vrot.lane.b32.xlu0 %v2002, 32
    %v2026 = vpop.permute.xlu0 %2025
    %v2035 = vadd.f32 %v1955, %v2012
    %v2036 = vadd.f32 %v1956, %v2014
    %v2037 = vadd.f32 %v1957, %v2016
    %v2038 = vadd.f32 %v1958, %v2018
    %v2039 = vadd.f32 %v1959, %v2020
    %v2040 = vadd.f32 %v1960, %v2022
    %v2041 = vadd.f32 %v1961, %v2024
    %v2042 = vadd.f32 %v1962, %v2026
    %v2043 = vtanh.pop %v2035
    %v2044 = vtanh.pop %v2036
    %v2045 = vtanh.pop %v2037
    %v2046 = vtanh.pop %v2038
    %v2047 = vtanh.pop %v2039
    %v2048 = vtanh.pop %v2040
    %v2049 = vtanh.pop %v2041
    %v2050 = vtanh.pop %v2042
    %2059 = vrot.lane.b32.xlu0 %v2043, 64
    %v2060 = vpop.permute.xlu0 %2059
    %2061 = vrot.lane.b32.xlu0 %v2044, 64
    %v2062 = vpop.permute.xlu0 %2061
    %2063 = vrot.lane.b32.xlu0 %v2045, 64
    %v2064 = vpop.permute.xlu0 %2063
    %2065 = vrot.lane.b32.xlu0 %v2046, 64
    %v2066 = vpop.permute.xlu0 %2065
    %2067 = vrot.lane.b32.xlu0 %v2047, 64
    %v2068 = vpop.permute.xlu0 %2067
    %2069 = vrot.lane.b32.xlu0 %v2048, 64
    %v2070 = vpop.permute.xlu0 %2069
    %2071 = vrot.lane.b32.xlu0 %v2049, 64
    %v2072 = vpop.permute.xlu0 %2071
    %2073 = vrot.lane.b32.xlu0 %v2050, 64
    %v2074 = vpop.permute.xlu0 %2073
    %v2083 = vmul.f32 %v1908, %v2060
    %v2084 = vmul.f32 %v1910, %v2062
    %v2085 = vmul.f32 %v1912, %v2064
    %v2086 = vmul.f32 %v1914, %v2066
    %v2087 = vmul.f32 %v1916, %v2068
    %v2088 = vmul.f32 %v1918, %v2070
    %v2089 = vmul.f32 %v1920, %v2072
    %v2090 = vmul.f32 %v1922, %v2074
    %v2091 = vpack.c.bf16 %v2083, %v2083
    %v2092 = vpack.c.bf16 %v2084, %v2084
    %v2093 = vpack.c.bf16 %v2085, %v2085
    %v2094 = vpack.c.bf16 %v2086, %v2086
    %v2095 = vpack.c.bf16 %v2087, %v2087
    %v2096 = vpack.c.bf16 %v2088, %v2088
    %v2097 = vpack.c.bf16 %v2089, %v2089
    %v2098 = vpack.c.bf16 %v2090, %v2090
    %v2107 = vunpack.c.l.b16 %v2091
    %v2108 = vunpack.c.l.b16 %v2092
    %v2109 = vunpack.c.l.b16 %v2093
    %v2110 = vunpack.c.l.b16 %v2094
    %v2111 = vunpack.c.l.b16 %v2095
    %v2112 = vunpack.c.l.b16 %v2096
    %v2113 = vunpack.c.l.b16 %v2097
    %v2114 = vunpack.c.l.b16 %v2098
    %v2115 = vrot.slane %v2107, 5
    %v2116 = vrot.slane %v2108, 4
    %v2117 = vsel %vm489, %v2116, %v2115
    %v2118 = vrot.slane %v2109, 3
    %v2119 = vsel %vm492, %v2118, %v2117
    %v2120 = vrot.slane %v2110, 2
    %v2121 = vsel %vm495, %v2120, %v2119
    %v2122 = vrot.slane %v2111, 1
    %v2123 = vsel %vm498, %v2122, %v2121
    %v2124 = vsel %vm501, %v2112, %v2123
    %v2125 = vrot.slane %v2113, 7
    %v2126 = vsel %vm504, %v2125, %v2124
    %v2127 = vrot.slane %v2114, 6
    %v2128 = vsel %vm507, %v2127, %v2126
    %v2129 = vpack.c.b16 %v2128, %v2128
    %2130 = vrot.lane.b32.xlu0 %v2129, 32
    %v2131 = vpop.permute.xlu0 %2130
    %v2133 = vsel %vm111, %v2131, 0
    %2135 = vmatprep.subr.bf16.mxu0 0
    %2136 = vmatpush1.bf16.msra.mxu0 %v201
    %2137 = vmatprep.subr.bf16.mxu0 0
    %2138 = vmatpush1.bf16.msra.mxu0 %v202
    %2139 = vmatprep.subr.bf16.mxu0 0
    %2140 = vmatpush1.bf16.msra.mxu0 0
    %2141 = vmatprep.subr.bf16.mxu0 0
    %2142 = vmatpush1.bf16.msra.mxu0 0
    %2143 = vmatprep.subr.bf16.mxu0 0
    %2144 = vmatpush1.bf16.msra.mxu0 0
    %2145 = vmatprep.subr.bf16.mxu0 0
    %2146 = vmatpush1.bf16.msra.mxu0 0
    %2147 = vmatprep.subr.bf16.mxu0 0
    %2148 = vmatpush1.bf16.msra.mxu0 0
    %2149 = vmatprep.subr.bf16.mxu0 0
    %2150 = vmatpush1.bf16.msra.mxu0 0
    %2151 = vmatprep.subr.bf16.mxu0 0
    %2152 = vmatpush1.bf16.msra.mxu0 0
    %2153 = vmatprep.subr.bf16.mxu0 0
    %2154 = vmatpush1.bf16.msra.mxu0 0
    %2155 = vmatprep.subr.bf16.mxu0 0
    %2156 = vmatpush1.bf16.msra.mxu0 0
    %2157 = vmatprep.subr.bf16.mxu0 0
    %2158 = vmatpush1.bf16.msra.mxu0 0
    %2159 = vmatprep.subr.bf16.mxu0 0
    %2160 = vmatpush1.bf16.msra.mxu0 0
    %2161 = vmatprep.subr.bf16.mxu0 0
    %2162 = vmatpush1.bf16.msra.mxu0 0
    %2163 = vmatprep.subr.bf16.mxu0 0
    %2164 = vmatpush1.bf16.msra.mxu0 0
    %2165 = vmatprep.subr.bf16.mxu0 0
    %2166 = vmatpush1.bf16.msra.mxu0 0
    %2167 = vmatprep.mubr.bf16.mxu0 0
    %2168 = vmatmul.mubr.bf16.gmra.mrb[0].mxu0 %v2133
    %v2169 = vpop.f32.mrb[0].mxu0
    %v2170 = vadd.f32 0.0, %v2169
    %v2171 = vpop.f32.mrb[0].mxu0
    %v2172 = vpop.f32.mrb[0].mxu0
    %v2173 = vpop.f32.mrb[0].mxu0
    %2174 = vdwg.mxu0
    %v2176 = vrot.slane %v2170, 2
    %v2177 = vrot.slane %v2170, 3
    %v2178 = vrot.slane %v2170, 4
    %v2179 = vrot.slane %v2170, 5
    %v2180 = vrot.slane %v2170, 6
    %v2181 = vrot.slane %v2170, 7
    %v2182 = vrot.slane %v2170, 1
    %v2191 = vadd.f32 %v159, %v2176
    %v2192 = vadd.f32 %v162, %v2177
    %v2193 = vadd.f32 %v167, %v2178
    %v2194 = vadd.f32 %v170, %v2179
    %v2195 = vadd.f32 %v175, %v2180
    %v2196 = vadd.f32 %v178, %v2181
    %v2197 = vadd.f32 %v183, %v2170
    %v2198 = vadd.f32 %v186, %v2182
    %v2199 = vxor.u32 %v2191, 2147483648
    %v2200 = vxor.u32 %v2192, 2147483648
    %v2201 = vxor.u32 %v2193, 2147483648
    %v2202 = vxor.u32 %v2194, 2147483648
    %v2203 = vxor.u32 %v2195, 2147483648
    %v2204 = vxor.u32 %v2196, 2147483648
    %v2205 = vxor.u32 %v2197, 2147483648
    %v2206 = vxor.u32 %v2198, 2147483648
    %v2207 = vmul.f32 %v2199, 1.442695
    %v2208 = vpow.pop %v2207
    %v2209 = vmul.f32 %v2200, 1.442695
    %v2210 = vpow.pop %v2209
    %v2211 = vmul.f32 %v2201, 1.442695
    %v2212 = vpow.pop %v2211
    %v2213 = vmul.f32 %v2202, 1.442695
    %v2214 = vpow.pop %v2213
    %v2215 = vmul.f32 %v2203, 1.442695
    %v2216 = vpow.pop %v2215
    %v2217 = vmul.f32 %v2204, 1.442695
    %v2218 = vpow.pop %v2217
    %v2219 = vmul.f32 %v2205, 1.442695
    %v2220 = vpow.pop %v2219
    %v2221 = vmul.f32 %v2206, 1.442695
    %v2222 = vpow.pop %v2221
    %v2223 = vadd.f32 %v2208, 1.0
    %v2224 = vadd.f32 %v2210, 1.0
    %v2225 = vadd.f32 %v2212, 1.0
    %v2226 = vadd.f32 %v2214, 1.0
    %v2227 = vadd.f32 %v2216, 1.0
    %v2228 = vadd.f32 %v2218, 1.0
    %v2229 = vadd.f32 %v2220, 1.0
    %v2230 = vadd.f32 %v2222, 1.0
    %v2231 = vrcp.pop %v2223
    %v2232 = vmul.f32 1.0, %v2231
    %v2233 = vrcp.pop %v2224
    %v2234 = vmul.f32 1.0, %v2233
    %v2235 = vrcp.pop %v2225
    %v2236 = vmul.f32 1.0, %v2235
    %v2237 = vrcp.pop %v2226
    %v2238 = vmul.f32 1.0, %v2237
    %v2239 = vrcp.pop %v2227
    %v2240 = vmul.f32 1.0, %v2239
    %v2241 = vrcp.pop %v2228
    %v2242 = vmul.f32 1.0, %v2241
    %v2243 = vrcp.pop %v2229
    %v2244 = vmul.f32 1.0, %v2243
    %v2245 = vrcp.pop %v2230
    %v2246 = vmul.f32 1.0, %v2245
    %v2247 = vtanh.pop %v2191
    %v2248 = vtanh.pop %v2192
    %v2249 = vtanh.pop %v2193
    %v2250 = vtanh.pop %v2194
    %v2251 = vtanh.pop %v2195
    %v2252 = vtanh.pop %v2196
    %v2253 = vtanh.pop %v2197
    %v2254 = vtanh.pop %v2198
    %v2263 = vrot.slane %v2035, 7
    %v2264 = vrot.slane %v2036, 7
    %v2265 = vrot.slane %v2037, 7
    %v2266 = vrot.slane %v2038, 7
    %v2267 = vrot.slane %v2039, 7
    %v2268 = vrot.slane %v2040, 7
    %v2269 = vrot.slane %v2041, 7
    %v2270 = vrot.slane %v2042, 7
    %v2279 = vmul.f32 %v2232, %v2263
    %v2280 = vmul.f32 %v2234, %v2264
    %v2281 = vmul.f32 %v2236, %v2265
    %v2282 = vmul.f32 %v2238, %v2266
    %v2283 = vmul.f32 %v2240, %v2267
    %v2284 = vmul.f32 %v2242, %v2268
    %v2285 = vmul.f32 %v2244, %v2269
    %v2286 = vmul.f32 %v2246, %v2270
    %2295 = vrot.lane.b32.xlu0 %v2247, 64
    %v2296 = vpop.permute.xlu0 %2295
    %2297 = vrot.lane.b32.xlu0 %v2248, 64
    %v2298 = vpop.permute.xlu0 %2297
    %2299 = vrot.lane.b32.xlu0 %v2249, 64
    %v2300 = vpop.permute.xlu0 %2299
    %2301 = vrot.lane.b32.xlu0 %v2250, 64
    %v2302 = vpop.permute.xlu0 %2301
    %2303 = vrot.lane.b32.xlu0 %v2251, 64
    %v2304 = vpop.permute.xlu0 %2303
    %2305 = vrot.lane.b32.xlu0 %v2252, 64
    %v2306 = vpop.permute.xlu0 %2305
    %2307 = vrot.lane.b32.xlu0 %v2253, 64
    %v2308 = vpop.permute.xlu0 %2307
    %2309 = vrot.lane.b32.xlu0 %v2254, 64
    %v2310 = vpop.permute.xlu0 %2309
    %v2319 = vmul.f32 %v2232, %v2296
    %v2320 = vmul.f32 %v2234, %v2298
    %v2321 = vmul.f32 %v2236, %v2300
    %v2322 = vmul.f32 %v2238, %v2302
    %v2323 = vmul.f32 %v2240, %v2304
    %v2324 = vmul.f32 %v2242, %v2306
    %v2325 = vmul.f32 %v2244, %v2308
    %v2326 = vmul.f32 %v2246, %v2310
    %2335 = vrot.lane.b32.xlu0 %v2319, 32
    %v2336 = vpop.permute.xlu0 %2335
    %2337 = vrot.lane.b32.xlu0 %v2320, 32
    %v2338 = vpop.permute.xlu0 %2337
    %2339 = vrot.lane.b32.xlu0 %v2321, 32
    %v2340 = vpop.permute.xlu0 %2339
    %2341 = vrot.lane.b32.xlu0 %v2322, 32
    %v2342 = vpop.permute.xlu0 %2341
    %2343 = vrot.lane.b32.xlu0 %v2323, 32
    %v2344 = vpop.permute.xlu0 %2343
    %2345 = vrot.lane.b32.xlu0 %v2324, 32
    %v2346 = vpop.permute.xlu0 %2345
    %2347 = vrot.lane.b32.xlu0 %v2325, 32
    %v2348 = vpop.permute.xlu0 %2347
    %2349 = vrot.lane.b32.xlu0 %v2326, 32
    %v2350 = vpop.permute.xlu0 %2349
    %v2359 = vadd.f32 %v2279, %v2336
    %v2360 = vadd.f32 %v2280, %v2338
    %v2361 = vadd.f32 %v2281, %v2340
    %v2362 = vadd.f32 %v2282, %v2342
    %v2363 = vadd.f32 %v2283, %v2344
    %v2364 = vadd.f32 %v2284, %v2346
    %v2365 = vadd.f32 %v2285, %v2348
    %v2366 = vadd.f32 %v2286, %v2350
    %v2367 = vtanh.pop %v2359
    %v2368 = vtanh.pop %v2360
    %v2369 = vtanh.pop %v2361
    %v2370 = vtanh.pop %v2362
    %v2371 = vtanh.pop %v2363
    %v2372 = vtanh.pop %v2364
    %v2373 = vtanh.pop %v2365
    %v2374 = vtanh.pop %v2366
    %2383 = vrot.lane.b32.xlu0 %v2367, 64
    %v2384 = vpop.permute.xlu0 %2383
    %2385 = vrot.lane.b32.xlu0 %v2368, 64
    %v2386 = vpop.permute.xlu0 %2385
    %2387 = vrot.lane.b32.xlu0 %v2369, 64
    %v2388 = vpop.permute.xlu0 %2387
    %2389 = vrot.lane.b32.xlu0 %v2370, 64
    %v2390 = vpop.permute.xlu0 %2389
    %2391 = vrot.lane.b32.xlu0 %v2371, 64
    %v2392 = vpop.permute.xlu0 %2391
    %2393 = vrot.lane.b32.xlu0 %v2372, 64
    %v2394 = vpop.permute.xlu0 %2393
    %2395 = vrot.lane.b32.xlu0 %v2373, 64
    %v2396 = vpop.permute.xlu0 %2395
    %2397 = vrot.lane.b32.xlu0 %v2374, 64
    %v2398 = vpop.permute.xlu0 %2397
    %v2407 = vmul.f32 %v2232, %v2384
    %v2408 = vmul.f32 %v2234, %v2386
    %v2409 = vmul.f32 %v2236, %v2388
    %v2410 = vmul.f32 %v2238, %v2390
    %v2411 = vmul.f32 %v2240, %v2392
    %v2412 = vmul.f32 %v2242, %v2394
    %v2413 = vmul.f32 %v2244, %v2396
    %v2414 = vmul.f32 %v2246, %v2398
    %v2415 = vpack.c.bf16 %v2407, %v2407
    %v2416 = vpack.c.bf16 %v2408, %v2408
    %v2417 = vpack.c.bf16 %v2409, %v2409
    %v2418 = vpack.c.bf16 %v2410, %v2410
    %v2419 = vpack.c.bf16 %v2411, %v2411
    %v2420 = vpack.c.bf16 %v2412, %v2412
    %v2421 = vpack.c.bf16 %v2413, %v2413
    %v2422 = vpack.c.bf16 %v2414, %v2414
    %v2431 = vunpack.c.l.b16 %v2415
    %v2432 = vunpack.c.l.b16 %v2416
    %v2433 = vunpack.c.l.b16 %v2417
    %v2434 = vunpack.c.l.b16 %v2418
    %v2435 = vunpack.c.l.b16 %v2419
    %v2436 = vunpack.c.l.b16 %v2420
    %v2437 = vunpack.c.l.b16 %v2421
    %v2438 = vunpack.c.l.b16 %v2422
    %v2439 = vrot.slane %v2431, 6
    %v2440 = vrot.slane %v2432, 5
    %v2441 = vsel %vm489, %v2440, %v2439
    %v2442 = vrot.slane %v2433, 4
    %v2443 = vsel %vm492, %v2442, %v2441
    %v2444 = vrot.slane %v2434, 3
    %v2445 = vsel %vm495, %v2444, %v2443
    %v2446 = vrot.slane %v2435, 2
    %v2447 = vsel %vm498, %v2446, %v2445
    %v2448 = vrot.slane %v2436, 1
    %v2449 = vsel %vm501, %v2448, %v2447
    %v2450 = vsel %vm504, %v2437, %v2449
    %v2451 = vrot.slane %v2438, 7
    %v2452 = vsel %vm507, %v2451, %v2450
    %v2453 = vpack.c.b16 %v2452, %v2452
    %2454 = vrot.lane.b32.xlu0 %v2453, 32
    %v2455 = vpop.permute.xlu0 %2454
    %v2457 = vsel %vm111, %v2455, 0
    %2459 = vmatprep.subr.bf16.mxu0 0
    %2460 = vmatpush1.bf16.msra.mxu0 %v201
    %2461 = vmatprep.subr.bf16.mxu0 0
    %2462 = vmatpush1.bf16.msra.mxu0 %v202
    %2463 = vmatprep.subr.bf16.mxu0 0
    %2464 = vmatpush1.bf16.msra.mxu0 0
    %2465 = vmatprep.subr.bf16.mxu0 0
    %2466 = vmatpush1.bf16.msra.mxu0 0
    %2467 = vmatprep.subr.bf16.mxu0 0
    %2468 = vmatpush1.bf16.msra.mxu0 0
    %2469 = vmatprep.subr.bf16.mxu0 0
    %2470 = vmatpush1.bf16.msra.mxu0 0
    %2471 = vmatprep.subr.bf16.mxu0 0
    %2472 = vmatpush1.bf16.msra.mxu0 0
    %2473 = vmatprep.subr.bf16.mxu0 0
    %2474 = vmatpush1.bf16.msra.mxu0 0
    %2475 = vmatprep.subr.bf16.mxu0 0
    %2476 = vmatpush1.bf16.msra.mxu0 0
    %2477 = vmatprep.subr.bf16.mxu0 0
    %2478 = vmatpush1.bf16.msra.mxu0 0
    %2479 = vmatprep.subr.bf16.mxu0 0
    %2480 = vmatpush1.bf16.msra.mxu0 0
    %2481 = vmatprep.subr.bf16.mxu0 0
    %2482 = vmatpush1.bf16.msra.mxu0 0
    %2483 = vmatprep.subr.bf16.mxu0 0
    %2484 = vmatpush1.bf16.msra.mxu0 0
    %2485 = vmatprep.subr.bf16.mxu0 0
    %2486 = vmatpush1.bf16.msra.mxu0 0
    %2487 = vmatprep.subr.bf16.mxu0 0
    %2488 = vmatpush1.bf16.msra.mxu0 0
    %2489 = vmatprep.subr.bf16.mxu0 0
    %2490 = vmatpush1.bf16.msra.mxu0 0
    %2491 = vmatprep.mubr.bf16.mxu0 0
    %2492 = vmatmul.mubr.bf16.gmra.mrb[0].mxu0 %v2457
    %v2493 = vpop.f32.mrb[0].mxu0
    %v2494 = vadd.f32 0.0, %v2493
    %v2495 = vpop.f32.mrb[0].mxu0
    %v2496 = vpop.f32.mrb[0].mxu0
    %v2497 = vpop.f32.mrb[0].mxu0
    %2498 = vdwg.mxu0
    %v2500 = vrot.slane %v2494, 1
    %v2501 = vrot.slane %v2494, 2
    %v2502 = vrot.slane %v2494, 3
    %v2503 = vrot.slane %v2494, 4
    %v2504 = vrot.slane %v2494, 5
    %v2505 = vrot.slane %v2494, 6
    %v2506 = vrot.slane %v2494, 7
    %v2515 = vadd.f32 %v159, %v2500
    %v2516 = vadd.f32 %v162, %v2501
    %v2517 = vadd.f32 %v167, %v2502
    %v2518 = vadd.f32 %v170, %v2503
    %v2519 = vadd.f32 %v175, %v2504
    %v2520 = vadd.f32 %v178, %v2505
    %v2521 = vadd.f32 %v183, %v2506
    %v2522 = vadd.f32 %v186, %v2494
    %v2523 = vxor.u32 %v2515, 2147483648
    %v2524 = vxor.u32 %v2516, 2147483648
    %v2525 = vxor.u32 %v2517, 2147483648
    %v2526 = vxor.u32 %v2518, 2147483648
    %v2527 = vxor.u32 %v2519, 2147483648
    %v2528 = vxor.u32 %v2520, 2147483648
    %v2529 = vxor.u32 %v2521, 2147483648
    %v2530 = vxor.u32 %v2522, 2147483648
    %v2531 = vmul.f32 %v2523, 1.442695
    %v2532 = vpow.pop %v2531
    %v2533 = vmul.f32 %v2524, 1.442695
    %v2534 = vpow.pop %v2533
    %v2535 = vmul.f32 %v2525, 1.442695
    %v2536 = vpow.pop %v2535
    %v2537 = vmul.f32 %v2526, 1.442695
    %v2538 = vpow.pop %v2537
    %v2539 = vmul.f32 %v2527, 1.442695
    %v2540 = vpow.pop %v2539
    %v2541 = vmul.f32 %v2528, 1.442695
    %v2542 = vpow.pop %v2541
    %v2543 = vmul.f32 %v2529, 1.442695
    %v2544 = vpow.pop %v2543
    %v2545 = vmul.f32 %v2530, 1.442695
    %v2546 = vpow.pop %v2545
    %v2547 = vadd.f32 %v2532, 1.0
    %v2548 = vadd.f32 %v2534, 1.0
    %v2549 = vadd.f32 %v2536, 1.0
    %v2550 = vadd.f32 %v2538, 1.0
    %v2551 = vadd.f32 %v2540, 1.0
    %v2552 = vadd.f32 %v2542, 1.0
    %v2553 = vadd.f32 %v2544, 1.0
    %v2554 = vadd.f32 %v2546, 1.0
    %v2555 = vrcp.pop %v2547
    %v2556 = vmul.f32 1.0, %v2555
    %v2557 = vrcp.pop %v2548
    %v2558 = vmul.f32 1.0, %v2557
    %v2559 = vrcp.pop %v2549
    %v2560 = vmul.f32 1.0, %v2559
    %v2561 = vrcp.pop %v2550
    %v2562 = vmul.f32 1.0, %v2561
    %v2563 = vrcp.pop %v2551
    %v2564 = vmul.f32 1.0, %v2563
    %v2565 = vrcp.pop %v2552
    %v2566 = vmul.f32 1.0, %v2565
    %v2567 = vrcp.pop %v2553
    %v2568 = vmul.f32 1.0, %v2567
    %v2569 = vrcp.pop %v2554
    %v2570 = vmul.f32 1.0, %v2569
    %v2571 = vtanh.pop %v2515
    %v2572 = vtanh.pop %v2516
    %v2573 = vtanh.pop %v2517
    %v2574 = vtanh.pop %v2518
    %v2575 = vtanh.pop %v2519
    %v2576 = vtanh.pop %v2520
    %v2577 = vtanh.pop %v2521
    %v2578 = vtanh.pop %v2522
    %v2587 = vrot.slane %v2359, 7
    %v2588 = vrot.slane %v2360, 7
    %v2589 = vrot.slane %v2361, 7
    %v2590 = vrot.slane %v2362, 7
    %v2591 = vrot.slane %v2363, 7
    %v2592 = vrot.slane %v2364, 7
    %v2593 = vrot.slane %v2365, 7
    %v2594 = vrot.slane %v2366, 7
    %v2603 = vmul.f32 %v2556, %v2587
    %v2604 = vmul.f32 %v2558, %v2588
    %v2605 = vmul.f32 %v2560, %v2589
    %v2606 = vmul.f32 %v2562, %v2590
    %v2607 = vmul.f32 %v2564, %v2591
    %v2608 = vmul.f32 %v2566, %v2592
    %v2609 = vmul.f32 %v2568, %v2593
    %v2610 = vmul.f32 %v2570, %v2594
    %2619 = vrot.lane.b32.xlu0 %v2571, 64
    %v2620 = vpop.permute.xlu0 %2619
    %2621 = vrot.lane.b32.xlu0 %v2572, 64
    %v2622 = vpop.permute.xlu0 %2621
    %2623 = vrot.lane.b32.xlu0 %v2573, 64
    %v2624 = vpop.permute.xlu0 %2623
    %2625 = vrot.lane.b32.xlu0 %v2574, 64
    %v2626 = vpop.permute.xlu0 %2625
    %2627 = vrot.lane.b32.xlu0 %v2575, 64
    %v2628 = vpop.permute.xlu0 %2627
    %2629 = vrot.lane.b32.xlu0 %v2576, 64
    %v2630 = vpop.permute.xlu0 %2629
    %2631 = vrot.lane.b32.xlu0 %v2577, 64
    %v2632 = vpop.permute.xlu0 %2631
    %2633 = vrot.lane.b32.xlu0 %v2578, 64
    %v2634 = vpop.permute.xlu0 %2633
    %v2643 = vmul.f32 %v2556, %v2620
    %v2644 = vmul.f32 %v2558, %v2622
    %v2645 = vmul.f32 %v2560, %v2624
    %v2646 = vmul.f32 %v2562, %v2626
    %v2647 = vmul.f32 %v2564, %v2628
    %v2648 = vmul.f32 %v2566, %v2630
    %v2649 = vmul.f32 %v2568, %v2632
    %v2650 = vmul.f32 %v2570, %v2634
    %2659 = vrot.lane.b32.xlu0 %v2643, 32
    %v2660 = vpop.permute.xlu0 %2659
    %2661 = vrot.lane.b32.xlu0 %v2644, 32
    %v2662 = vpop.permute.xlu0 %2661
    %2663 = vrot.lane.b32.xlu0 %v2645, 32
    %v2664 = vpop.permute.xlu0 %2663
    %2665 = vrot.lane.b32.xlu0 %v2646, 32
    %v2666 = vpop.permute.xlu0 %2665
    %2667 = vrot.lane.b32.xlu0 %v2647, 32
    %v2668 = vpop.permute.xlu0 %2667
    %2669 = vrot.lane.b32.xlu0 %v2648, 32
    %v2670 = vpop.permute.xlu0 %2669
    %2671 = vrot.lane.b32.xlu0 %v2649, 32
    %v2672 = vpop.permute.xlu0 %2671
    %2673 = vrot.lane.b32.xlu0 %v2650, 32
    %v2674 = vpop.permute.xlu0 %2673
    %v2683 = vadd.f32 %v2603, %v2660
    %v2684 = vadd.f32 %v2604, %v2662
    %v2685 = vadd.f32 %v2605, %v2664
    %v2686 = vadd.f32 %v2606, %v2666
    %v2687 = vadd.f32 %v2607, %v2668
    %v2688 = vadd.f32 %v2608, %v2670
    %v2689 = vadd.f32 %v2609, %v2672
    %v2690 = vadd.f32 %v2610, %v2674
    %v2691 = vtanh.pop %v2683
    %v2692 = vtanh.pop %v2684
    %v2693 = vtanh.pop %v2685
    %v2694 = vtanh.pop %v2686
    %v2695 = vtanh.pop %v2687
    %v2696 = vtanh.pop %v2688
    %v2697 = vtanh.pop %v2689
    %v2698 = vtanh.pop %v2690
    %2707 = vrot.lane.b32.xlu0 %v2691, 64
    %v2708 = vpop.permute.xlu0 %2707
    %2709 = vrot.lane.b32.xlu0 %v2692, 64
    %v2710 = vpop.permute.xlu0 %2709
    %2711 = vrot.lane.b32.xlu0 %v2693, 64
    %v2712 = vpop.permute.xlu0 %2711
    %2713 = vrot.lane.b32.xlu0 %v2694, 64
    %v2714 = vpop.permute.xlu0 %2713
    %2715 = vrot.lane.b32.xlu0 %v2695, 64
    %v2716 = vpop.permute.xlu0 %2715
    %2717 = vrot.lane.b32.xlu0 %v2696, 64
    %v2718 = vpop.permute.xlu0 %2717
    %2719 = vrot.lane.b32.xlu0 %v2697, 64
    %v2720 = vpop.permute.xlu0 %2719
    %2721 = vrot.lane.b32.xlu0 %v2698, 64
    %v2722 = vpop.permute.xlu0 %2721
    %v2731 = vmul.f32 %v2556, %v2708
    %v2732 = vmul.f32 %v2558, %v2710
    %v2733 = vmul.f32 %v2560, %v2712
    %v2734 = vmul.f32 %v2562, %v2714
    %v2735 = vmul.f32 %v2564, %v2716
    %v2736 = vmul.f32 %v2566, %v2718
    %v2737 = vmul.f32 %v2568, %v2720
    %v2738 = vmul.f32 %v2570, %v2722
    %vm2739 = vcmask 1040384
    %v2740 = vsel %vm2739, %v456, %v787
    %v2741 = vsel %vm2739, %v457, %v788
    %v2742 = vsel %vm2739, %v458, %v789
    %v2743 = vsel %vm2739, %v459, %v790
    %v2744 = vsel %vm2739, %v460, %v791
    %v2745 = vsel %vm2739, %v461, %v792
    %v2746 = vsel %vm2739, %v462, %v793
    %v2747 = vsel %vm2739, %v463, %v794
    %vm2748 = vcmask 1041408
    %v2749 = vsel %vm2748, %v2740, %v1111
    %v2750 = vsel %vm2748, %v2741, %v1112
    %v2751 = vsel %vm2748, %v2742, %v1113
    %v2752 = vsel %vm2748, %v2743, %v1114
    %v2753 = vsel %vm2748, %v2744, %v1115
    %v2754 = vsel %vm2748, %v2745, %v1116
    %v2755 = vsel %vm2748, %v2746, %v1117
    %v2756 = vsel %vm2748, %v2747, %v1118
    %vm2757 = vcmask 1042432
    %v2758 = vsel %vm2757, %v2749, %v1435
    %v2759 = vsel %vm2757, %v2750, %v1436
    %v2760 = vsel %vm2757, %v2751, %v1437
    %v2761 = vsel %vm2757, %v2752, %v1438
    %v2762 = vsel %vm2757, %v2753, %v1439
    %v2763 = vsel %vm2757, %v2754, %v1440
    %v2764 = vsel %vm2757, %v2755, %v1441
    %v2765 = vsel %vm2757, %v2756, %v1442
    %vm2766 = vcmask 1043456
    %v2767 = vsel %vm2766, %v2758, %v1759
    %v2768 = vsel %vm2766, %v2759, %v1760
    %v2769 = vsel %vm2766, %v2760, %v1761
    %v2770 = vsel %vm2766, %v2761, %v1762
    %v2771 = vsel %vm2766, %v2762, %v1763
    %v2772 = vsel %vm2766, %v2763, %v1764
    %v2773 = vsel %vm2766, %v2764, %v1765
    %v2774 = vsel %vm2766, %v2765, %v1766
    %vm2775 = vcmask 1044480
    %v2776 = vsel %vm2775, %v2767, %v2083
    %v2777 = vsel %vm2775, %v2768, %v2084
    %v2778 = vsel %vm2775, %v2769, %v2085
    %v2779 = vsel %vm2775, %v2770, %v2086
    %v2780 = vsel %vm2775, %v2771, %v2087
    %v2781 = vsel %vm2775, %v2772, %v2088
    %v2782 = vsel %vm2775, %v2773, %v2089
    %v2783 = vsel %vm2775, %v2774, %v2090
    %vm2784 = vcmask 1045504
    %v2785 = vsel %vm2784, %v2776, %v2407
    %v2786 = vsel %vm2784, %v2777, %v2408
    %v2787 = vsel %vm2784, %v2778, %v2409
    %v2788 = vsel %vm2784, %v2779, %v2410
    %v2789 = vsel %vm2784, %v2780, %v2411
    %v2790 = vsel %vm2784, %v2781, %v2412
    %v2791 = vsel %vm2784, %v2782, %v2413
    %v2792 = vsel %vm2784, %v2783, %v2414
    %vm2793 = vcmask 1046528
    %v2794 = vsel %vm2793, %v2785, %v2731
    %v2795 = vsel %vm2793, %v2786, %v2732
    %v2796 = vsel %vm2793, %v2787, %v2733
    %v2797 = vsel %vm2793, %v2788, %v2734
    %v2798 = vsel %vm2793, %v2789, %v2735
    %v2799 = vsel %vm2793, %v2790, %v2736
    %v2800 = vsel %vm2793, %v2791, %v2737
    %v2801 = vsel %vm2793, %v2792, %v2738
    %2810 = vrot.lane.b32.xlu0 %v2794, 32
    %v2811 = vpop.permute.xlu0 %2810
    %2812 = vrot.lane.b32.xlu0 %v2795, 32
    %v2813 = vpop.permute.xlu0 %2812
    %2814 = vrot.lane.b32.xlu0 %v2796, 32
    %v2815 = vpop.permute.xlu0 %2814
    %2816 = vrot.lane.b32.xlu0 %v2797, 32
    %v2817 = vpop.permute.xlu0 %2816
    %2818 = vrot.lane.b32.xlu0 %v2798, 32
    %v2819 = vpop.permute.xlu0 %2818
    %2820 = vrot.lane.b32.xlu0 %v2799, 32
    %v2821 = vpop.permute.xlu0 %2820
    %2822 = vrot.lane.b32.xlu0 %v2800, 32
    %v2823 = vpop.permute.xlu0 %2822
    %2824 = vrot.lane.b32.xlu0 %v2801, 32
    %v2825 = vpop.permute.xlu0 %2824
    %2834 = vst.msk [vmem:[#allocation8] sm:$0xff] %vm111, %v2811
    %2835 = vst.msk [vmem:[#allocation8 + $0x8] sm:$0xff] %vm111, %v2813
    %2836 = vst.msk [vmem:[#allocation8 + $0x10] sm:$0xff] %vm111, %v2815
    %2837 = vst.msk [vmem:[#allocation8 + $0x18] sm:$0xff] %vm111, %v2817
    %2838 = vst.msk [vmem:[#allocation8 + $0x20] sm:$0xff] %vm111, %v2819
    %2839 = vst.msk [vmem:[#allocation8 + $0x28] sm:$0xff] %vm111, %v2821
    %2840 = vst.msk [vmem:[#allocation8 + $0x30] sm:$0xff] %vm111, %v2823
    %2841 = vst.msk [vmem:[#allocation8 + $0x38] sm:$0xff] %vm111, %v2825
    // Predicated region
    $region30: #{tpu_custom_call.1} parent=1 // pred_check
      _
    $region31: #{tpu_custom_call.1} parent=1 // pred_check_branch
      %2843 = sbr.rel (0) target = $region33
    $region32: #{tpu_custom_call.1} parent=1 // pred_region
      %s2845 = ssub.s32 1024, 1024
      %2846 = vsyncadd [#allocation4], %s2845
      %s2847 = sshll.u32 [#allocation8], 4
      %s2848 = int_to_ptr.vmem [resolvable:$true] %s2847
      %2853 = dma.vmem_to_hbm [thread:$0]  %s2848, 1024, %s4, [#allocation4], 128, 128, 8
    $region33: #{tpu_custom_call.1} parent=1 // pred_fallthru
      _
    // Predicated region
    $region34: #{tpu_custom_call.1} parent=1 // pred_check
      _
    $region35: #{tpu_custom_call.1} parent=1 // pred_check_branch
      %2855 = sbr.rel (0) target = $region37
    $region36: #{tpu_custom_call.1} parent=1 // pred_region
      %2856 = dma.done [#allocation4], 1024
    $region37: #{tpu_custom_call.1} parent=1 // pred_fallthru
      _
    %2857 = vsyncpa [#allocation3], 1
    %2858 = vsyncpa [#allocation6], 1
    %2859 = vsyncpa [#allocation4], 1

</llo_original>
